<compile_context>
chip_gen: v7x
topology: tpu7x:2x2x1
jax: 0.10.0
libtpu: 0.0.40
codegen_flags: <defaults>
</compile_context>

<pallas_src>
import functools

import jax
import jax.numpy as jnp
from jax.experimental import pallas as pl
from jax.experimental.pallas import tpu as pltpu


_VMEM_LIMIT_BYTES = 32 * 1024 * 1024   # scoped-VMEM request, safe on v5e/v6e/v7x
_VMEM_WORK_BUDGET = 20 * 1024 * 1024   # planning budget (headroom under the limit)


# -----------------------------------------------------------------------------
# Tiled matmul + bias:  (M, K) @ (K, N) + (1, N)   (bf16 operands, f32 accum)
# Used for the hoisted LSTM input projection and (fallback) output projection.
# -----------------------------------------------------------------------------
def _matmul_bias_kernel(x_ref, w_ref, b_ref, o_ref):
    o_ref[...] = (
        jnp.dot(x_ref[...], w_ref[...], preferred_element_type=jnp.float32)
        + b_ref[...]
    ).astype(o_ref.dtype)


def matmul_bias(x, w, b, *, out_dtype=jnp.float32, tile_m=256, tile_n=512):
    """x: (M, K) bf16; w: (K, N) bf16; b: (1, N) f32 -> (M, N) out_dtype."""
    M, K = x.shape
    N = w.shape[-1]
    tm = M if M <= tile_m else tile_m
    tn = N if N <= tile_n else tile_n
    grid = (pl.cdiv(M, tm), pl.cdiv(N, tn))
    return pl.pallas_call(
        _matmul_bias_kernel,
        out_shape=jax.ShapeDtypeStruct((M, N), out_dtype),
        grid=grid,
        in_specs=[
            pl.BlockSpec((tm, K), lambda i, j: (i, 0)),
            pl.BlockSpec((K, tn), lambda i, j: (0, j)),
            pl.BlockSpec((1, tn), lambda i, j: (0, j)),
        ],
        out_specs=pl.BlockSpec((tm, tn), lambda i, j: (i, j)),
        compiler_params=pltpu.CompilerParams(
            dimension_semantics=("parallel", "parallel"),
            vmem_limit_bytes=_VMEM_LIMIT_BYTES,
        ),
    )(x, w, b)


# -----------------------------------------------------------------------------
# LSTM recurrence body shared by the fused / unfused kernels.
#   gx_ref : (tc, B, 4H) f32  precomputed x @ W_ih + (b_ih + b_hh), one chunk
#   whh_ref: (H, 4H)     bf16
#   hid_ref: (tc, B, H)  f32  per-step hidden states (scratch or output block)
#   h_sc/c_sc: (B, H)    f32  carries, persist across grid (time-chunk) steps
# -----------------------------------------------------------------------------
def _recurrence_chunk(gx_ref, whh_ref, h0_ref, c0_ref, hid_ref, h_sc, c_sc):
    tc, _, _ = gx_ref.shape
    H = h_sc.shape[-1]

    @pl.when(pl.program_id(0) == 0)
    def _():
        h_sc[...] = h0_ref[...]
        c_sc[...] = c0_ref[...]

    whh = whh_ref[...]  # (H, 4H) bf16, hoisted out of the time loop

    @pl.loop(0, tc, unroll=(tc <= 16))
    def _(t):
        gates = gx_ref[t] + jnp.dot(
            h_sc[...].astype(whh.dtype), whh, preferred_element_type=jnp.float32
        )  # (B, 4H) f32
        i_g = jax.nn.sigmoid(gates[:, 0 * H:1 * H])
        f_g = jax.nn.sigmoid(gates[:, 1 * H:2 * H])
        g_g = jnp.tanh(gates[:, 2 * H:3 * H])
        o_g = jax.nn.sigmoid(gates[:, 3 * H:4 * H])

        c_new = f_g * c_sc[...] + i_g * g_g
        h_new = o_g * jnp.tanh(c_new)

        c_sc[...] = c_new
        h_sc[...] = h_new
        hid_ref[t] = h_new


def _lstm_fused_chunk_kernel(gx_ref, whh_ref, wlin_ref, blin_ref, h0_ref,
                             c0_ref, y_ref, hn_ref, cn_ref, h_sc, c_sc, hid_sc):
    _recurrence_chunk(gx_ref, whh_ref, h0_ref, c0_ref, hid_sc, h_sc, c_sc)

    # Fused per-chunk output projection: hidden states never leave VMEM.
    tc, B, H = hid_sc.shape
    hid = hid_sc[...].reshape(tc * B, H).astype(wlin_ref.dtype)
    y = jnp.dot(hid, wlin_ref[...], preferred_element_type=jnp.float32) + blin_ref[...]
    y_ref[...] = y.astype(y_ref.dtype)

    hn_ref[...] = h_sc[...]
    cn_ref[...] = c_sc[...]


def _lstm_chunk_kernel(gx_ref, whh_ref, h0_ref, c0_ref,
                       hid_ref, hn_ref, cn_ref, h_sc, c_sc):
    _recurrence_chunk(gx_ref, whh_ref, h0_ref, c0_ref, hid_ref, h_sc, c_sc)
    hn_ref[...] = h_sc[...]
    cn_ref[...] = c_sc[...]


def lstm_fused_forward(gates_x, w_hh, w_lin, b_lin, h0, c0, *, tc):
    T, B, fourH = gates_x.shape
    H = h0.shape[-1]
    V = w_lin.shape[-1]
    n_chunks = T // tc
    return pl.pallas_call(
        _lstm_fused_chunk_kernel,
        out_shape=(
            jax.ShapeDtypeStruct((T * B, V), jnp.float32),  # logits
            jax.ShapeDtypeStruct((B, H), jnp.float32),      # h_T
            jax.ShapeDtypeStruct((B, H), jnp.float32),      # c_T
        ),
        grid=(n_chunks,),
        in_specs=[
            pl.BlockSpec((tc, B, fourH), lambda i: (i, 0, 0)),  # gates_x chunk
            pl.BlockSpec((H, fourH), lambda i: (0, 0)),          # W_hh (resident)
            pl.BlockSpec((H, V), lambda i: (0, 0)),              # W_lin (resident)
            pl.BlockSpec((1, V), lambda i: (0, 0)),              # b_lin
            pl.BlockSpec((B, H), lambda i: (0, 0)),              # h0
            pl.BlockSpec((B, H), lambda i: (0, 0)),              # c0
        ],
        out_specs=(
            pl.BlockSpec((tc * B, V), lambda i: (i, 0)),         # logits chunk
            pl.BlockSpec((B, H), lambda i: (0, 0)),
            pl.BlockSpec((B, H), lambda i: (0, 0)),
        ),
        scratch_shapes=[
            pltpu.VMEM((B, H), jnp.float32),        # h carry
            pltpu.VMEM((B, H), jnp.float32),        # c carry
            pltpu.VMEM((tc, B, H), jnp.float32),    # chunk hidden states
        ],
        compiler_params=pltpu.CompilerParams(
            dimension_semantics=("arbitrary",),
            vmem_limit_bytes=_VMEM_LIMIT_BYTES),
    )(gates_x, w_hh, w_lin, b_lin, h0, c0)


def lstm_forward(gates_x, w_hh, h0, c0, *, tc):
    """Unfused fallback (large vocab): streams (T, B, H) hidden states to HBM."""
    T, B, fourH = gates_x.shape
    H = h0.shape[-1]
    n_chunks = T // tc
    return pl.pallas_call(
        _lstm_chunk_kernel,
        out_shape=(
            jax.ShapeDtypeStruct((T, B, H), jnp.float32),
            jax.ShapeDtypeStruct((B, H), jnp.float32),
            jax.ShapeDtypeStruct((B, H), jnp.float32),
        ),
        grid=(n_chunks,),
        in_specs=[
            pl.BlockSpec((tc, B, fourH), lambda i: (i, 0, 0)),
            pl.BlockSpec((H, fourH), lambda i: (0, 0)),
            pl.BlockSpec((B, H), lambda i: (0, 0)),
            pl.BlockSpec((B, H), lambda i: (0, 0)),
        ],
        out_specs=(
            pl.BlockSpec((tc, B, H), lambda i: (i, 0, 0)),
            pl.BlockSpec((B, H), lambda i: (0, 0)),
            pl.BlockSpec((B, H), lambda i: (0, 0)),
        ),
        scratch_shapes=[
            pltpu.VMEM((B, H), jnp.float32),
            pltpu.VMEM((B, H), jnp.float32),
        ],
        compiler_params=pltpu.CompilerParams(
            dimension_semantics=("arbitrary",),
            vmem_limit_bytes=_VMEM_LIMIT_BYTES),
    )(gates_x, w_hh, h0, c0)


def _plan_recurrence(T, B, H, V):
    """Pick (fuse_head, time_chunk) so one chunk + resident weights fit VMEM."""
    f32, bf16 = 4, 2
    # Fused-head footprint: resident W_hh/W_lin/b_lin + carries, plus per-step
    # gates_x (2x double-buffered), logits out (2x), hidden-state scratch.
    fused_fixed = H * 4 * H * bf16 + H * V * bf16 + V * f32 + 8 * B * H * f32
    fused_per_t = 2 * B * 4 * H * f32 + 2 * B * V * f32 + B * H * f32
    if fused_fixed + fused_per_t <= _VMEM_WORK_BUDGET:
        max_tc = (_VMEM_WORK_BUDGET - fused_fixed) // fused_per_t
        if max_tc >= T:
            return True, T
        for tc in range(min(max_tc, T), 0, -1):
            # (tc*B) % 8 keeps the logits output block sublane-aligned.
            if T % tc == 0 and (tc * B) % 8 == 0:
                return True, tc
    # Unfused fallback: stream hidden states to HBM, project with matmul_bias.
    unf_fixed = H * 4 * H * bf16 + 8 * B * H * f32
    unf_per_t = 2 * B * 4 * H * f32 + 2 * B * H * f32
    max_tc = max(1, (_VMEM_WORK_BUDGET - unf_fixed) // unf_per_t)
    if max_tc >= T:
        return False, T
    for tc in range(min(max_tc, T), 0, -1):
        if T % tc == 0:
            return False, tc
    return False, 1


# -----------------------------------------------------------------------------
# LanguageModel wrapper (num_layers=1, seq_model='lstm')
# -----------------------------------------------------------------------------
def init_params(key, output_size, embedding_size, hidden_size):
    k = jax.random.split(key, 6)
    V, E, H = output_size, embedding_size, hidden_size
    scale = 1.0 / jnp.sqrt(jnp.float32(H))
    params = {
        # nn.Embedding: (num_embeddings, embedding_dim), N(0,1) init
        "emb": jax.random.normal(k[0], (V, E), jnp.float32),
        # nn.LSTM weights, pre-transposed to (in, 4H); gate order [i, f, g, o]
        "w_ih": jax.random.uniform(k[1], (E, 4 * H), jnp.float32, -scale, scale),
        "w_hh": jax.random.uniform(k[2], (H, 4 * H), jnp.float32, -scale, scale),
        # combined bias_ih + bias_hh (kept 2D for lane layout)
        "b_lstm": jax.random.uniform(k[3], (1, 4 * H), jnp.float32, -scale, scale),
        # nn.Linear: weight (V, H) in PyTorch; stored transposed as (H, V)
        "w_lin": jax.random.uniform(k[4], (H, V), jnp.float32, -scale, scale),
        "b_lin": jax.random.uniform(k[5], (1, V), jnp.float32, -scale, scale),
    }
    return params


@functools.partial(jax.jit, static_argnames=("hidden_size",))
def language_model_forward(params, x_ids, hidden_size, h=None):
    """x_ids: (T, B) int32. Returns (y, (h_n, c_n)).

    y:   (T*B, output_size)
    h_n: (1, B, hidden_size)   (num_layers = 1)
    c_n: (1, B, hidden_size)
    """
    T, B = x_ids.shape
    H = hidden_size
    E = params["emb"].shape[1]
    V = params["w_lin"].shape[-1]

    # Embedding gather (glue, plain JAX): (T, B) -> (T, B, E).
    x_emb = jnp.take(params["emb"], x_ids, axis=0)

    # bf16 matmul operands; f32 accumulation happens inside the kernels.
    w_ih = params["w_ih"].astype(jnp.bfloat16)
    w_hh = params["w_hh"].astype(jnp.bfloat16)
    w_lin = params["w_lin"].astype(jnp.bfloat16)

    # Hoisted input projection: one big (T*B, E) @ (E, 4H) + bias matmul.
    gates_x = matmul_bias(
        x_emb.reshape(T * B, E).astype(jnp.bfloat16), w_ih, params["b_lstm"]
    ).reshape(T, B, 4 * H)

    if h is None:
        h0 = jnp.zeros((B, H), jnp.float32)
        c0 = jnp.zeros((B, H), jnp.float32)
    else:
        h0 = h[0][0]
        c0 = h[1][0]

    fuse_head, tc = _plan_recurrence(T, B, H, V)
    if fuse_head:
        y, h_n, c_n = lstm_fused_forward(
            gates_x, w_hh, w_lin, params["b_lin"], h0, c0, tc=tc)
    else:
        hid, h_n, c_n = lstm_forward(gates_x, w_hh, h0, c0, tc=tc)
        y = matmul_bias(
            hid.reshape(T * B, H).astype(jnp.bfloat16), w_lin, params["b_lin"])

    return y, (h_n[None, ...], c_n[None, ...])


# -----------------------------------------------------------------------------
# Pure-JAX reference (mirrors the kernels' bf16-operand / f32-accum math)
# -----------------------------------------------------------------------------
def reference_forward(params, x_ids, hidden_size):
    T, B = x_ids.shape
    H = hidden_size
    E = params["emb"].shape[1]
    x_emb = jnp.take(params["emb"], x_ids, axis=0)

    w_ih = params["w_ih"].astype(jnp.bfloat16)
    w_hh = params["w_hh"].astype(jnp.bfloat16)
    w_lin = params["w_lin"].astype(jnp.bfloat16)

    gates_x = (
        jnp.dot(x_emb.reshape(T * B, E).astype(jnp.bfloat16), w_ih,
                preferred_element_type=jnp.float32)
        + params["b_lstm"]
    ).reshape(T, B, 4 * H)

    h0 = jnp.zeros((B, H), jnp.float32)
    c0 = jnp.zeros((B, H), jnp.float32)

    def step(carry, g_x):
        h, c = carry
        gates = g_x + jnp.dot(h.astype(jnp.bfloat16), w_hh,
                              preferred_element_type=jnp.float32)
        i = jax.nn.sigmoid(gates[:, 0 * H:1 * H])
        f = jax.nn.sigmoid(gates[:, 1 * H:2 * H])
        g = jnp.tanh(gates[:, 2 * H:3 * H])
        o = jax.nn.sigmoid(gates[:, 3 * H:4 * H])
        c_new = f * c + i * g
        h_new = o * jnp.tanh(c_new)
        return (h_new, c_new), h_new

    (h_n, c_n), outs = jax.lax.scan(step, (h0, c0), gates_x)
    y = (
        jnp.dot(outs.reshape(T * B, H).astype(jnp.bfloat16), w_lin,
                preferred_element_type=jnp.float32)
        + params["b_lin"]
    )
    return y, (h_n[None, ...], c_n[None, ...])


if __name__ == "__main__":
    # Small shapes consistent with the module's forward contract.
    T, B = 8, 8
    embedding_size = 32
    hidden_size = 32
    output_size = 64   # vocab size

    key = jax.random.PRNGKey(0)
    pkey, xkey = jax.random.split(key)
    params = init_params(pkey, output_size, embedding_size, hidden_size)
    x_ids = jax.random.randint(xkey, (T, B), 0, output_size, dtype=jnp.int32)

    y, (h_n, c_n) = language_model_forward(params, x_ids, hidden_size)
    jax.block_until_ready((y, h_n, c_n))

    assert y.shape == (T * B, output_size)
    assert h_n.shape == (1, B, hidden_size)
    assert c_n.shape == (1, B, hidden_size)

    y_ref, (h_ref, c_ref) = reference_forward(params, x_ids, hidden_size)
    assert jnp.allclose(y, y_ref, atol=2e-2, rtol=2e-2)
    assert jnp.allclose(h_n, h_ref, atol=2e-2, rtol=2e-2)
    assert jnp.allclose(c_n, c_ref, atol=2e-2, rtol=2e-2)

    print("KERNEL_OK")
</pallas_src>

<mosaic_0001>
module attributes {stable_mosaic.version = 11 : i64} {
  func.func @_matmul_bias_kernel(%arg0: i32, %arg1: i32, %arg2: memref<64x32xbf16, #tpu.memory_space<vmem>>, %arg3: memref<32x128xbf16, #tpu.memory_space<vmem>>, %arg4: memref<1x128xf32, #tpu.memory_space<vmem>>, %arg5: memref<64x128xf32, #tpu.memory_space<vmem>>) attributes {dimension_semantics = [#tpu.dimension_semantics<parallel>, #tpu.dimension_semantics<parallel>], iteration_bounds = array<i64: 1, 1>, scalar_prefetch = 0 : i64, scratch_operands = 0 : i64, tpu.core_type = #tpu.core_type<tc>, window_params = [{transform_indices = @transform_0, window_bounds = array<i64: 64, 32>}, {transform_indices = @transform_1, window_bounds = array<i64: 32, 128>}, {transform_indices = @transform_2, window_bounds = array<i64: 1, 128>}, {transform_indices = @transform_3, window_bounds = array<i64: 64, 128>}]} {
    %c0 = arith.constant 0 : index
    %c0_0 = arith.constant 0 : index
    %0 = vector.load %arg2[%c0, %c0_0] : memref<64x32xbf16, #tpu.memory_space<vmem>>, vector<64x32xbf16>
    %c0_1 = arith.constant 0 : index
    %c0_2 = arith.constant 0 : index
    %1 = vector.load %arg3[%c0_1, %c0_2] : memref<32x128xbf16, #tpu.memory_space<vmem>>, vector<32x128xbf16>
    %cst = arith.constant dense<0.000000e+00> : vector<64x128xf32>
    %2 = tpu.matmul %0, %1, %cst {dimension_numbers = #tpu.dot_dimension_numbers<[1], [0], [0], [1], [0, 0, 1, 1], [], []>} : vector<64x32xbf16>, vector<32x128xbf16>, vector<64x128xf32> -> vector<64x128xf32>
    %c0_3 = arith.constant 0 : index
    %c0_4 = arith.constant 0 : index
    %3 = vector.load %arg4[%c0_3, %c0_4] : memref<1x128xf32, #tpu.memory_space<vmem>>, vector<1x128xf32>
    %4 = vector.broadcast %3 : vector<1x128xf32> to vector<64x128xf32>
    %5 = arith.addf %2, %4 : vector<64x128xf32>
    %c0_5 = arith.constant 0 : index
    %c0_6 = arith.constant 0 : index
    %6 = vector.load %arg5[%c0_5, %c0_6] : memref<64x128xf32, #tpu.memory_space<vmem>>, vector<64x128xf32>
    tpu.vector_store %arg5[%c0_5, %c0_6], %5 {strides = array<i32>} : memref<64x128xf32, #tpu.memory_space<vmem>>, vector<64x128xf32>,
    return
  }
  func.func @transform_0(%arg0: i32, %arg1: i32) -> (i32, i32) {
    %c0_i32 = arith.constant 0 : i32
    %c0_i32_0 = arith.constant 0 : i32
    return %arg0, %c0_i32 : i32, i32
  }
  func.func @transform_1(%arg0: i32, %arg1: i32) -> (i32, i32) {
    %c0_i32 = arith.constant 0 : i32
    %c0_i32_0 = arith.constant 0 : i32
    return %c0_i32, %arg1 : i32, i32
  }
  func.func @transform_2(%arg0: i32, %arg1: i32) -> (i32, i32) {
    %c0_i32 = arith.constant 0 : i32
    %c0_i32_0 = arith.constant 0 : i32
    return %c0_i32, %arg1 : i32, i32
  }
  func.func @transform_3(%arg0: i32, %arg1: i32) -> (i32, i32) {
    %c0_i32 = arith.constant 0 : i32
    return %arg0, %arg1 : i32, i32
  }
}

module attributes {stable_mosaic.version = 11 : i64} {
  func.func @_lstm_fused_chunk_kernel(%arg0: i32, %arg1: memref<8x8x128xf32, #tpu.memory_space<vmem>>, %arg2: memref<32x128xbf16, #tpu.memory_space<vmem>>, %arg3: memref<32x64xbf16, #tpu.memory_space<vmem>>, %arg4: memref<1x64xf32, #tpu.memory_space<vmem>>, %arg5: memref<8x32xf32, #tpu.memory_space<vmem>>, %arg6: memref<8x32xf32, #tpu.memory_space<vmem>>, %arg7: memref<64x64xf32, #tpu.memory_space<vmem>>, %arg8: memref<8x32xf32, #tpu.memory_space<vmem>>, %arg9: memref<8x32xf32, #tpu.memory_space<vmem>>, %arg10: memref<8x32xf32, #tpu.memory_space<vmem>>, %arg11: memref<8x32xf32, #tpu.memory_space<vmem>>, %arg12: memref<8x8x32xf32, #tpu.memory_space<vmem>>) attributes {dimension_semantics = [#tpu.dimension_semantics<arbitrary>], iteration_bounds = array<i64: 1>, scalar_prefetch = 0 : i64, scratch_operands = 3 : i64, tpu.core_type = #tpu.core_type<tc>, window_params = [{transform_indices = @transform_0, window_bounds = array<i64: 8, 8, 128>}, {pipeline_mode = #tpu.pipeline_mode<synchronous>, transform_indices = @transform_1, window_bounds = array<i64: 32, 128>}, {pipeline_mode = #tpu.pipeline_mode<synchronous>, transform_indices = @transform_2, window_bounds = array<i64: 32, 64>}, {pipeline_mode = #tpu.pipeline_mode<synchronous>, transform_indices = @transform_3, window_bounds = array<i64: 1, 64>}, {pipeline_mode = #tpu.pipeline_mode<synchronous>, transform_indices = @transform_4, window_bounds = array<i64: 8, 32>}, {pipeline_mode = #tpu.pipeline_mode<synchronous>, transform_indices = @transform_5, window_bounds = array<i64: 8, 32>}, {transform_indices = @transform_6, window_bounds = array<i64: 64, 64>}, {pipeline_mode = #tpu.pipeline_mode<synchronous>, transform_indices = @transform_7, window_bounds = array<i64: 8, 32>}, {pipeline_mode = #tpu.pipeline_mode<synchronous>, transform_indices = @transform_8, window_bounds = array<i64: 8, 32>}]} {
    %c0_i32 = arith.constant 0 : i32
    %0 = arith.cmpi eq, %arg0, %c0_i32 : i32
    %1 = arith.extui %0 : i1 to i32
    %c0_i32_0 = arith.constant 0 : i32
    %2 = arith.cmpi ne, %1, %c0_i32_0 : i32
    scf.if %2 {
      %c0_164 = arith.constant 0 : index
      %c0_165 = arith.constant 0 : index
      %345 = vector.load %arg5[%c0_164, %c0_165] : memref<8x32xf32, #tpu.memory_space<vmem>>, vector<8x32xf32>
      %c0_166 = arith.constant 0 : index
      %c0_167 = arith.constant 0 : index
      %346 = vector.load %arg10[%c0_166, %c0_167] : memref<8x32xf32, #tpu.memory_space<vmem>>, vector<8x32xf32>
      tpu.vector_store %arg10[%c0_166, %c0_167], %345 {strides = array<i32>} : memref<8x32xf32, #tpu.memory_space<vmem>>, vector<8x32xf32>,
      %c0_168 = arith.constant 0 : index
      %c0_169 = arith.constant 0 : index
      %347 = vector.load %arg6[%c0_168, %c0_169] : memref<8x32xf32, #tpu.memory_space<vmem>>, vector<8x32xf32>
      %c0_170 = arith.constant 0 : index
      %c0_171 = arith.constant 0 : index
      %348 = vector.load %arg11[%c0_170, %c0_171] : memref<8x32xf32, #tpu.memory_space<vmem>>, vector<8x32xf32>
      tpu.vector_store %arg11[%c0_170, %c0_171], %347 {strides = array<i32>} : memref<8x32xf32, #tpu.memory_space<vmem>>, vector<8x32xf32>,
    } else {
    }
    %c0 = arith.constant 0 : index
    %c0_1 = arith.constant 0 : index
    %3 = vector.load %arg2[%c0, %c0_1] : memref<32x128xbf16, #tpu.memory_space<vmem>>, vector<32x128xbf16>
    %c0_i32_2 = arith.constant 0 : i32
    %c1_i32 = arith.constant 1 : i32
    %4 = arith.muli %c0_i32_2, %c1_i32 : i32
    %c0_i32_3 = arith.constant 0 : i32
    %5 = arith.addi %c0_i32_3, %4 : i32
    %6 = arith.index_cast %5 : i32 to index
    %c0_4 = arith.constant 0 : index
    %c0_5 = arith.constant 0 : index
    %7 = vector.load %arg1[%6, %c0_4, %c0_5] : memref<8x8x128xf32, #tpu.memory_space<vmem>>, vector<1x8x128xf32>
    %8 = vector.shape_cast %7 : vector<1x8x128xf32> to vector<8x128xf32>
    %c0_6 = arith.constant 0 : index
    %c0_7 = arith.constant 0 : index
    %9 = vector.load %arg10[%c0_6, %c0_7] : memref<8x32xf32, #tpu.memory_space<vmem>>, vector<8x32xf32>
    %10 = arith.truncf %9 : vector<8x32xf32> to vector<8x32xbf16>
    %cst = arith.constant dense<0.000000e+00> : vector<8x128xf32>
    %11 = tpu.matmul %10, %3, %cst {dimension_numbers = #tpu.dot_dimension_numbers<[1], [0], [0], [1], [0, 0, 1, 1], [], []>} : vector<8x32xbf16>, vector<32x128xbf16>, vector<8x128xf32> -> vector<8x128xf32>
    %12 = arith.addf %8, %11 : vector<8x128xf32>
    %13 = vector.extract_strided_slice %12 {offsets = [0, 0], sizes = [8, 32], strides = [1, 1]} : vector<8x128xf32> to vector<8x32xf32>
    %14 = arith.negf %13 : vector<8x32xf32>
    %15 = math.exp %14 : vector<8x32xf32>
    %cst_8 = arith.constant 1.000000e+00 : f32
    %16 = vector.broadcast %cst_8 : f32 to vector<8x32xf32>
    %17 = arith.addf %16, %15 : vector<8x32xf32>
    %18 = arith.divf %16, %17 : vector<8x32xf32>
    %19 = vector.extract_strided_slice %12 {offsets = [0, 32], sizes = [8, 32], strides = [1, 1]} : vector<8x128xf32> to vector<8x32xf32>
    %20 = arith.negf %19 : vector<8x32xf32>
    %21 = math.exp %20 : vector<8x32xf32>
    %cst_9 = arith.constant 1.000000e+00 : f32
    %22 = vector.broadcast %cst_9 : f32 to vector<8x32xf32>
    %23 = arith.addf %22, %21 : vector<8x32xf32>
    %24 = arith.divf %22, %23 : vector<8x32xf32>
    %25 = vector.extract_strided_slice %12 {offsets = [0, 64], sizes = [8, 32], strides = [1, 1]} : vector<8x128xf32> to vector<8x32xf32>
    %26 = math.tanh %25 : vector<8x32xf32>
    %27 = vector.extract_strided_slice %12 {offsets = [0, 96], sizes = [8, 32], strides = [1, 1]} : vector<8x128xf32> to vector<8x32xf32>
    %28 = arith.negf %27 : vector<8x32xf32>
    %29 = math.exp %28 : vector<8x32xf32>
    %cst_10 = arith.constant 1.000000e+00 : f32
    %30 = vector.broadcast %cst_10 : f32 to vector<8x32xf32>
    %31 = arith.addf %30, %29 : vector<8x32xf32>
    %32 = arith.divf %30, %31 : vector<8x32xf32>
    %c0_11 = arith.constant 0 : index
    %c0_12 = arith.constant 0 : index
    %33 = vector.load %arg11[%c0_11, %c0_12] : memref<8x32xf32, #tpu.memory_space<vmem>>, vector<8x32xf32>
    %34 = arith.mulf %24, %33 : vector<8x32xf32>
    %35 = arith.mulf %18, %26 : vector<8x32xf32>
    %36 = arith.addf %34, %35 : vector<8x32xf32>
    %37 = math.tanh %36 : vector<8x32xf32>
    %38 = arith.mulf %32, %37 : vector<8x32xf32>
    %c0_13 = arith.constant 0 : index
    %c0_14 = arith.constant 0 : index
    %39 = vector.load %arg11[%c0_13, %c0_14] : memref<8x32xf32, #tpu.memory_space<vmem>>, vector<8x32xf32>
    tpu.vector_store %arg11[%c0_13, %c0_14], %36 {strides = array<i32>} : memref<8x32xf32, #tpu.memory_space<vmem>>, vector<8x32xf32>,
    %c0_15 = arith.constant 0 : index
    %c0_16 = arith.constant 0 : index
    %40 = vector.load %arg10[%c0_15, %c0_16] : memref<8x32xf32, #tpu.memory_space<vmem>>, vector<8x32xf32>
    tpu.vector_store %arg10[%c0_15, %c0_16], %38 {strides = array<i32>} : memref<8x32xf32, #tpu.memory_space<vmem>>, vector<8x32xf32>,
    %41 = arith.index_cast %5 : i32 to index
    %c0_17 = arith.constant 0 : index
    %c0_18 = arith.constant 0 : index
    %42 = vector.load %arg12[%41, %c0_17, %c0_18] : memref<8x8x32xf32, #tpu.memory_space<vmem>>, vector<1x8x32xf32>
    %43 = vector.shape_cast %42 : vector<1x8x32xf32> to vector<8x32xf32>
    %44 = vector.shape_cast %38 : vector<8x32xf32> to vector<1x8x32xf32>
    tpu.vector_store %arg12[%41, %c0_17, %c0_18], %44 {strides = array<i32>} : memref<8x8x32xf32, #tpu.memory_space<vmem>>, vector<1x8x32xf32>,
    %c1_i32_19 = arith.constant 1 : i32
    %c1_i32_20 = arith.constant 1 : i32
    %45 = arith.muli %c1_i32_19, %c1_i32_20 : i32
    %c0_i32_21 = arith.constant 0 : i32
    %46 = arith.addi %c0_i32_21, %45 : i32
    %47 = arith.index_cast %46 : i32 to index
    %c0_22 = arith.constant 0 : index
    %c0_23 = arith.constant 0 : index
    %48 = vector.load %arg1[%47, %c0_22, %c0_23] : memref<8x8x128xf32, #tpu.memory_space<vmem>>, vector<1x8x128xf32>
    %49 = vector.shape_cast %48 : vector<1x8x128xf32> to vector<8x128xf32>
    %c0_24 = arith.constant 0 : index
    %c0_25 = arith.constant 0 : index
    %50 = vector.load %arg10[%c0_24, %c0_25] : memref<8x32xf32, #tpu.memory_space<vmem>>, vector<8x32xf32>
    %51 = arith.truncf %50 : vector<8x32xf32> to vector<8x32xbf16>
    %cst_26 = arith.constant dense<0.000000e+00> : vector<8x128xf32>
    %52 = tpu.matmul %51, %3, %cst_26 {dimension_numbers = #tpu.dot_dimension_numbers<[1], [0], [0], [1], [0, 0, 1, 1], [], []>} : vector<8x32xbf16>, vector<32x128xbf16>, vector<8x128xf32> -> vector<8x128xf32>
    %53 = arith.addf %49, %52 : vector<8x128xf32>
    %54 = vector.extract_strided_slice %53 {offsets = [0, 0], sizes = [8, 32], strides = [1, 1]} : vector<8x128xf32> to vector<8x32xf32>
    %55 = arith.negf %54 : vector<8x32xf32>
    %56 = math.exp %55 : vector<8x32xf32>
    %cst_27 = arith.constant 1.000000e+00 : f32
    %57 = vector.broadcast %cst_27 : f32 to vector<8x32xf32>
    %58 = arith.addf %57, %56 : vector<8x32xf32>
    %59 = arith.divf %57, %58 : vector<8x32xf32>
    %60 = vector.extract_strided_slice %53 {offsets = [0, 32], sizes = [8, 32], strides = [1, 1]} : vector<8x128xf32> to vector<8x32xf32>
    %61 = arith.negf %60 : vector<8x32xf32>
    %62 = math.exp %61 : vector<8x32xf32>
    %cst_28 = arith.constant 1.000000e+00 : f32
    %63 = vector.broadcast %cst_28 : f32 to vector<8x32xf32>
    %64 = arith.addf %63, %62 : vector<8x32xf32>
    %65 = arith.divf %63, %64 : vector<8x32xf32>
    %66 = vector.extract_strided_slice %53 {offsets = [0, 64], sizes = [8, 32], strides = [1, 1]} : vector<8x128xf32> to vector<8x32xf32>
    %67 = math.tanh %66 : vector<8x32xf32>
    %68 = vector.extract_strided_slice %53 {offsets = [0, 96], sizes = [8, 32], strides = [1, 1]} : vector<8x128xf32> to vector<8x32xf32>
    %69 = arith.negf %68 : vector<8x32xf32>
    %70 = math.exp %69 : vector<8x32xf32>
    %cst_29 = arith.constant 1.000000e+00 : f32
    %71 = vector.broadcast %cst_29 : f32 to vector<8x32xf32>
    %72 = arith.addf %71, %70 : vector<8x32xf32>
    %73 = arith.divf %71, %72 : vector<8x32xf32>
    %c0_30 = arith.constant 0 : index
    %c0_31 = arith.constant 0 : index
    %74 = vector.load %arg11[%c0_30, %c0_31] : memref<8x32xf32, #tpu.memory_space<vmem>>, vector<8x32xf32>
    %75 = arith.mulf %65, %74 : vector<8x32xf32>
    %76 = arith.mulf %59, %67 : vector<8x32xf32>
    %77 = arith.addf %75, %76 : vector<8x32xf32>
    %78 = math.tanh %77 : vector<8x32xf32>
    %79 = arith.mulf %73, %78 : vector<8x32xf32>
    %c0_32 = arith.constant 0 : index
    %c0_33 = arith.constant 0 : index
    %80 = vector.load %arg11[%c0_32, %c0_33] : memref<8x32xf32, #tpu.memory_space<vmem>>, vector<8x32xf32>
    tpu.vector_store %arg11[%c0_32, %c0_33], %77 {strides = array<i32>} : memref<8x32xf32, #tpu.memory_space<vmem>>, vector<8x32xf32>,
    %c0_34 = arith.constant 0 : index
    %c0_35 = arith.constant 0 : index
    %81 = vector.load %arg10[%c0_34, %c0_35] : memref<8x32xf32, #tpu.memory_space<vmem>>, vector<8x32xf32>
    tpu.vector_store %arg10[%c0_34, %c0_35], %79 {strides = array<i32>} : memref<8x32xf32, #tpu.memory_space<vmem>>, vector<8x32xf32>,
    %82 = arith.index_cast %46 : i32 to index
    %c0_36 = arith.constant 0 : index
    %c0_37 = arith.constant 0 : index
    %83 = vector.load %arg12[%82, %c0_36, %c0_37] : memref<8x8x32xf32, #tpu.memory_space<vmem>>, vector<1x8x32xf32>
    %84 = vector.shape_cast %83 : vector<1x8x32xf32> to vector<8x32xf32>
    %85 = vector.shape_cast %79 : vector<8x32xf32> to vector<1x8x32xf32>
    tpu.vector_store %arg12[%82, %c0_36, %c0_37], %85 {strides = array<i32>} : memref<8x8x32xf32, #tpu.memory_space<vmem>>, vector<1x8x32xf32>,
    %c2_i32 = arith.constant 2 : i32
    %c1_i32_38 = arith.constant 1 : i32
    %86 = arith.muli %c2_i32, %c1_i32_38 : i32
    %c0_i32_39 = arith.constant 0 : i32
    %87 = arith.addi %c0_i32_39, %86 : i32
    %88 = arith.index_cast %87 : i32 to index
    %c0_40 = arith.constant 0 : index
    %c0_41 = arith.constant 0 : index
    %89 = vector.load %arg1[%88, %c0_40, %c0_41] : memref<8x8x128xf32, #tpu.memory_space<vmem>>, vector<1x8x128xf32>
    %90 = vector.shape_cast %89 : vector<1x8x128xf32> to vector<8x128xf32>
    %c0_42 = arith.constant 0 : index
    %c0_43 = arith.constant 0 : index
    %91 = vector.load %arg10[%c0_42, %c0_43] : memref<8x32xf32, #tpu.memory_space<vmem>>, vector<8x32xf32>
    %92 = arith.truncf %91 : vector<8x32xf32> to vector<8x32xbf16>
    %cst_44 = arith.constant dense<0.000000e+00> : vector<8x128xf32>
    %93 = tpu.matmul %92, %3, %cst_44 {dimension_numbers = #tpu.dot_dimension_numbers<[1], [0], [0], [1], [0, 0, 1, 1], [], []>} : vector<8x32xbf16>, vector<32x128xbf16>, vector<8x128xf32> -> vector<8x128xf32>
    %94 = arith.addf %90, %93 : vector<8x128xf32>
    %95 = vector.extract_strided_slice %94 {offsets = [0, 0], sizes = [8, 32], strides = [1, 1]} : vector<8x128xf32> to vector<8x32xf32>
    %96 = arith.negf %95 : vector<8x32xf32>
    %97 = math.exp %96 : vector<8x32xf32>
    %cst_45 = arith.constant 1.000000e+00 : f32
    %98 = vector.broadcast %cst_45 : f32 to vector<8x32xf32>
    %99 = arith.addf %98, %97 : vector<8x32xf32>
    %100 = arith.divf %98, %99 : vector<8x32xf32>
    %101 = vector.extract_strided_slice %94 {offsets = [0, 32], sizes = [8, 32], strides = [1, 1]} : vector<8x128xf32> to vector<8x32xf32>
    %102 = arith.negf %101 : vector<8x32xf32>
    %103 = math.exp %102 : vector<8x32xf32>
    %cst_46 = arith.constant 1.000000e+00 : f32
    %104 = vector.broadcast %cst_46 : f32 to vector<8x32xf32>
    %105 = arith.addf %104, %103 : vector<8x32xf32>
    %106 = arith.divf %104, %105 : vector<8x32xf32>
    %107 = vector.extract_strided_slice %94 {offsets = [0, 64], sizes = [8, 32], strides = [1, 1]} : vector<8x128xf32> to vector<8x32xf32>
    %108 = math.tanh %107 : vector<8x32xf32>
    %109 = vector.extract_strided_slice %94 {offsets = [0, 96], sizes = [8, 32], strides = [1, 1]} : vector<8x128xf32> to vector<8x32xf32>
    %110 = arith.negf %109 : vector<8x32xf32>
    %111 = math.exp %110 : vector<8x32xf32>
    %cst_47 = arith.constant 1.000000e+00 : f32
    %112 = vector.broadcast %cst_47 : f32 to vector<8x32xf32>
    %113 = arith.addf %112, %111 : vector<8x32xf32>
    %114 = arith.divf %112, %113 : vector<8x32xf32>
    %c0_48 = arith.constant 0 : index
    %c0_49 = arith.constant 0 : index
    %115 = vector.load %arg11[%c0_48, %c0_49] : memref<8x32xf32, #tpu.memory_space<vmem>>, vector<8x32xf32>
    %116 = arith.mulf %106, %115 : vector<8x32xf32>
    %117 = arith.mulf %100, %108 : vector<8x32xf32>
    %118 = arith.addf %116, %117 : vector<8x32xf32>
    %119 = math.tanh %118 : vector<8x32xf32>
    %120 = arith.mulf %114, %119 : vector<8x32xf32>
    %c0_50 = arith.constant 0 : index
    %c0_51 = arith.constant 0 : index
    %121 = vector.load %arg11[%c0_50, %c0_51] : memref<8x32xf32, #tpu.memory_space<vmem>>, vector<8x32xf32>
    tpu.vector_store %arg11[%c0_50, %c0_51], %118 {strides = array<i32>} : memref<8x32xf32, #tpu.memory_space<vmem>>, vector<8x32xf32>,
    %c0_52 = arith.constant 0 : index
    %c0_53 = arith.constant 0 : index
    %122 = vector.load %arg10[%c0_52, %c0_53] : memref<8x32xf32, #tpu.memory_space<vmem>>, vector<8x32xf32>
    tpu.vector_store %arg10[%c0_52, %c0_53], %120 {strides = array<i32>} : memref<8x32xf32, #tpu.memory_space<vmem>>, vector<8x32xf32>,
    %123 = arith.index_cast %87 : i32 to index
    %c0_54 = arith.constant 0 : index
    %c0_55 = arith.constant 0 : index
    %124 = vector.load %arg12[%123, %c0_54, %c0_55] : memref<8x8x32xf32, #tpu.memory_space<vmem>>, vector<1x8x32xf32>
    %125 = vector.shape_cast %124 : vector<1x8x32xf32> to vector<8x32xf32>
    %126 = vector.shape_cast %120 : vector<8x32xf32> to vector<1x8x32xf32>
    tpu.vector_store %arg12[%123, %c0_54, %c0_55], %126 {strides = array<i32>} : memref<8x8x32xf32, #tpu.memory_space<vmem>>, vector<1x8x32xf32>,
    %c3_i32 = arith.constant 3 : i32
    %c1_i32_56 = arith.constant 1 : i32
    %127 = arith.muli %c3_i32, %c1_i32_56 : i32
    %c0_i32_57 = arith.constant 0 : i32
    %128 = arith.addi %c0_i32_57, %127 : i32
    %129 = arith.index_cast %128 : i32 to index
    %c0_58 = arith.constant 0 : index
    %c0_59 = arith.constant 0 : index
    %130 = vector.load %arg1[%129, %c0_58, %c0_59] : memref<8x8x128xf32, #tpu.memory_space<vmem>>, vector<1x8x128xf32>
    %131 = vector.shape_cast %130 : vector<1x8x128xf32> to vector<8x128xf32>
    %c0_60 = arith.constant 0 : index
    %c0_61 = arith.constant 0 : index
    %132 = vector.load %arg10[%c0_60, %c0_61] : memref<8x32xf32, #tpu.memory_space<vmem>>, vector<8x32xf32>
    %133 = arith.truncf %132 : vector<8x32xf32> to vector<8x32xbf16>
    %cst_62 = arith.constant dense<0.000000e+00> : vector<8x128xf32>
    %134 = tpu.matmul %133, %3, %cst_62 {dimension_numbers = #tpu.dot_dimension_numbers<[1], [0], [0], [1], [0, 0, 1, 1], [], []>} : vector<8x32xbf16>, vector<32x128xbf16>, vector<8x128xf32> -> vector<8x128xf32>
    %135 = arith.addf %131, %134 : vector<8x128xf32>
    %136 = vector.extract_strided_slice %135 {offsets = [0, 0], sizes = [8, 32], strides = [1, 1]} : vector<8x128xf32> to vector<8x32xf32>
    %137 = arith.negf %136 : vector<8x32xf32>
    %138 = math.exp %137 : vector<8x32xf32>
    %cst_63 = arith.constant 1.000000e+00 : f32
    %139 = vector.broadcast %cst_63 : f32 to vector<8x32xf32>
    %140 = arith.addf %139, %138 : vector<8x32xf32>
    %141 = arith.divf %139, %140 : vector<8x32xf32>
    %142 = vector.extract_strided_slice %135 {offsets = [0, 32], sizes = [8, 32], strides = [1, 1]} : vector<8x128xf32> to vector<8x32xf32>
    %143 = arith.negf %142 : vector<8x32xf32>
    %144 = math.exp %143 : vector<8x32xf32>
    %cst_64 = arith.constant 1.000000e+00 : f32
    %145 = vector.broadcast %cst_64 : f32 to vector<8x32xf32>
    %146 = arith.addf %145, %144 : vector<8x32xf32>
    %147 = arith.divf %145, %146 : vector<8x32xf32>
    %148 = vector.extract_strided_slice %135 {offsets = [0, 64], sizes = [8, 32], strides = [1, 1]} : vector<8x128xf32> to vector<8x32xf32>
    %149 = math.tanh %148 : vector<8x32xf32>
    %150 = vector.extract_strided_slice %135 {offsets = [0, 96], sizes = [8, 32], strides = [1, 1]} : vector<8x128xf32> to vector<8x32xf32>
    %151 = arith.negf %150 : vector<8x32xf32>
    %152 = math.exp %151 : vector<8x32xf32>
    %cst_65 = arith.constant 1.000000e+00 : f32
    %153 = vector.broadcast %cst_65 : f32 to vector<8x32xf32>
    %154 = arith.addf %153, %152 : vector<8x32xf32>
    %155 = arith.divf %153, %154 : vector<8x32xf32>
    %c0_66 = arith.constant 0 : index
    %c0_67 = arith.constant 0 : index
    %156 = vector.load %arg11[%c0_66, %c0_67] : memref<8x32xf32, #tpu.memory_space<vmem>>, vector<8x32xf32>
    %157 = arith.mulf %147, %156 : vector<8x32xf32>
    %158 = arith.mulf %141, %149 : vector<8x32xf32>
    %159 = arith.addf %157, %158 : vector<8x32xf32>
    %160 = math.tanh %159 : vector<8x32xf32>
    %161 = arith.mulf %155, %160 : vector<8x32xf32>
    %c0_68 = arith.constant 0 : index
    %c0_69 = arith.constant 0 : index
    %162 = vector.load %arg11[%c0_68, %c0_69] : memref<8x32xf32, #tpu.memory_space<vmem>>, vector<8x32xf32>
    tpu.vector_store %arg11[%c0_68, %c0_69], %159 {strides = array<i32>} : memref<8x32xf32, #tpu.memory_space<vmem>>, vector<8x32xf32>,
    %c0_70 = arith.constant 0 : index
    %c0_71 = arith.constant 0 : index
    %163 = vector.load %arg10[%c0_70, %c0_71] : memref<8x32xf32, #tpu.memory_space<vmem>>, vector<8x32xf32>
    tpu.vector_store %arg10[%c0_70, %c0_71], %161 {strides = array<i32>} : memref<8x32xf32, #tpu.memory_space<vmem>>, vector<8x32xf32>,
    %164 = arith.index_cast %128 : i32 to index
    %c0_72 = arith.constant 0 : index
    %c0_73 = arith.constant 0 : index
    %165 = vector.load %arg12[%164, %c0_72, %c0_73] : memref<8x8x32xf32, #tpu.memory_space<vmem>>, vector<1x8x32xf32>
    %166 = vector.shape_cast %165 : vector<1x8x32xf32> to vector<8x32xf32>
    %167 = vector.shape_cast %161 : vector<8x32xf32> to vector<1x8x32xf32>
    tpu.vector_store %arg12[%164, %c0_72, %c0_73], %167 {strides = array<i32>} : memref<8x8x32xf32, #tpu.memory_space<vmem>>, vector<1x8x32xf32>,
    %c4_i32 = arith.constant 4 : i32
    %c1_i32_74 = arith.constant 1 : i32
    %168 = arith.muli %c4_i32, %c1_i32_74 : i32
    %c0_i32_75 = arith.constant 0 : i32
    %169 = arith.addi %c0_i32_75, %168 : i32
    %170 = arith.index_cast %169 : i32 to index
    %c0_76 = arith.constant 0 : index
    %c0_77 = arith.constant 0 : index
    %171 = vector.load %arg1[%170, %c0_76, %c0_77] : memref<8x8x128xf32, #tpu.memory_space<vmem>>, vector<1x8x128xf32>
    %172 = vector.shape_cast %171 : vector<1x8x128xf32> to vector<8x128xf32>
    %c0_78 = arith.constant 0 : index
    %c0_79 = arith.constant 0 : index
    %173 = vector.load %arg10[%c0_78, %c0_79] : memref<8x32xf32, #tpu.memory_space<vmem>>, vector<8x32xf32>
    %174 = arith.truncf %173 : vector<8x32xf32> to vector<8x32xbf16>
    %cst_80 = arith.constant dense<0.000000e+00> : vector<8x128xf32>
    %175 = tpu.matmul %174, %3, %cst_80 {dimension_numbers = #tpu.dot_dimension_numbers<[1], [0], [0], [1], [0, 0, 1, 1], [], []>} : vector<8x32xbf16>, vector<32x128xbf16>, vector<8x128xf32> -> vector<8x128xf32>
    %176 = arith.addf %172, %175 : vector<8x128xf32>
    %177 = vector.extract_strided_slice %176 {offsets = [0, 0], sizes = [8, 32], strides = [1, 1]} : vector<8x128xf32> to vector<8x32xf32>
    %178 = arith.negf %177 : vector<8x32xf32>
    %179 = math.exp %178 : vector<8x32xf32>
    %cst_81 = arith.constant 1.000000e+00 : f32
    %180 = vector.broadcast %cst_81 : f32 to vector<8x32xf32>
    %181 = arith.addf %180, %179 : vector<8x32xf32>
    %182 = arith.divf %180, %181 : vector<8x32xf32>
    %183 = vector.extract_strided_slice %176 {offsets = [0, 32], sizes = [8, 32], strides = [1, 1]} : vector<8x128xf32> to vector<8x32xf32>
    %184 = arith.negf %183 : vector<8x32xf32>
    %185 = math.exp %184 : vector<8x32xf32>
    %cst_82 = arith.constant 1.000000e+00 : f32
    %186 = vector.broadcast %cst_82 : f32 to vector<8x32xf32>
    %187 = arith.addf %186, %185 : vector<8x32xf32>
    %188 = arith.divf %186, %187 : vector<8x32xf32>
    %189 = vector.extract_strided_slice %176 {offsets = [0, 64], sizes = [8, 32], strides = [1, 1]} : vector<8x128xf32> to vector<8x32xf32>
    %190 = math.tanh %189 : vector<8x32xf32>
    %191 = vector.extract_strided_slice %176 {offsets = [0, 96], sizes = [8, 32], strides = [1, 1]} : vector<8x128xf32> to vector<8x32xf32>
    %192 = arith.negf %191 : vector<8x32xf32>
    %193 = math.exp %192 : vector<8x32xf32>
    %cst_83 = arith.constant 1.000000e+00 : f32
    %194 = vector.broadcast %cst_83 : f32 to vector<8x32xf32>
    %195 = arith.addf %194, %193 : vector<8x32xf32>
    %196 = arith.divf %194, %195 : vector<8x32xf32>
    %c0_84 = arith.constant 0 : index
    %c0_85 = arith.constant 0 : index
    %197 = vector.load %arg11[%c0_84, %c0_85] : memref<8x32xf32, #tpu.memory_space<vmem>>, vector<8x32xf32>
    %198 = arith.mulf %188, %197 : vector<8x32xf32>
    %199 = arith.mulf %182, %190 : vector<8x32xf32>
    %200 = arith.addf %198, %199 : vector<8x32xf32>
    %201 = math.tanh %200 : vector<8x32xf32>
    %202 = arith.mulf %196, %201 : vector<8x32xf32>
    %c0_86 = arith.constant 0 : index
    %c0_87 = arith.constant 0 : index
    %203 = vector.load %arg11[%c0_86, %c0_87] : memref<8x32xf32, #tpu.memory_space<vmem>>, vector<8x32xf32>
    tpu.vector_store %arg11[%c0_86, %c0_87], %200 {strides = array<i32>} : memref<8x32xf32, #tpu.memory_space<vmem>>, vector<8x32xf32>,
    %c0_88 = arith.constant 0 : index
    %c0_89 = arith.constant 0 : index
    %204 = vector.load %arg10[%c0_88, %c0_89] : memref<8x32xf32, #tpu.memory_space<vmem>>, vector<8x32xf32>
    tpu.vector_store %arg10[%c0_88, %c0_89], %202 {strides = array<i32>} : memref<8x32xf32, #tpu.memory_space<vmem>>, vector<8x32xf32>,
    %205 = arith.index_cast %169 : i32 to index
    %c0_90 = arith.constant 0 : index
    %c0_91 = arith.constant 0 : index
    %206 = vector.load %arg12[%205, %c0_90, %c0_91] : memref<8x8x32xf32, #tpu.memory_space<vmem>>, vector<1x8x32xf32>
    %207 = vector.shape_cast %206 : vector<1x8x32xf32> to vector<8x32xf32>
    %208 = vector.shape_cast %202 : vector<8x32xf32> to vector<1x8x32xf32>
    tpu.vector_store %arg12[%205, %c0_90, %c0_91], %208 {strides = array<i32>} : memref<8x8x32xf32, #tpu.memory_space<vmem>>, vector<1x8x32xf32>,
    %c5_i32 = arith.constant 5 : i32
    %c1_i32_92 = arith.constant 1 : i32
    %209 = arith.muli %c5_i32, %c1_i32_92 : i32
    %c0_i32_93 = arith.constant 0 : i32
    %210 = arith.addi %c0_i32_93, %209 : i32
    %211 = arith.index_cast %210 : i32 to index
    %c0_94 = arith.constant 0 : index
    %c0_95 = arith.constant 0 : index
    %212 = vector.load %arg1[%211, %c0_94, %c0_95] : memref<8x8x128xf32, #tpu.memory_space<vmem>>, vector<1x8x128xf32>
    %213 = vector.shape_cast %212 : vector<1x8x128xf32> to vector<8x128xf32>
    %c0_96 = arith.constant 0 : index
    %c0_97 = arith.constant 0 : index
    %214 = vector.load %arg10[%c0_96, %c0_97] : memref<8x32xf32, #tpu.memory_space<vmem>>, vector<8x32xf32>
    %215 = arith.truncf %214 : vector<8x32xf32> to vector<8x32xbf16>
    %cst_98 = arith.constant dense<0.000000e+00> : vector<8x128xf32>
    %216 = tpu.matmul %215, %3, %cst_98 {dimension_numbers = #tpu.dot_dimension_numbers<[1], [0], [0], [1], [0, 0, 1, 1], [], []>} : vector<8x32xbf16>, vector<32x128xbf16>, vector<8x128xf32> -> vector<8x128xf32>
    %217 = arith.addf %213, %216 : vector<8x128xf32>
    %218 = vector.extract_strided_slice %217 {offsets = [0, 0], sizes = [8, 32], strides = [1, 1]} : vector<8x128xf32> to vector<8x32xf32>
    %219 = arith.negf %218 : vector<8x32xf32>
    %220 = math.exp %219 : vector<8x32xf32>
    %cst_99 = arith.constant 1.000000e+00 : f32
    %221 = vector.broadcast %cst_99 : f32 to vector<8x32xf32>
    %222 = arith.addf %221, %220 : vector<8x32xf32>
    %223 = arith.divf %221, %222 : vector<8x32xf32>
    %224 = vector.extract_strided_slice %217 {offsets = [0, 32], sizes = [8, 32], strides = [1, 1]} : vector<8x128xf32> to vector<8x32xf32>
    %225 = arith.negf %224 : vector<8x32xf32>
    %226 = math.exp %225 : vector<8x32xf32>
    %cst_100 = arith.constant 1.000000e+00 : f32
    %227 = vector.broadcast %cst_100 : f32 to vector<8x32xf32>
    %228 = arith.addf %227, %226 : vector<8x32xf32>
    %229 = arith.divf %227, %228 : vector<8x32xf32>
    %230 = vector.extract_strided_slice %217 {offsets = [0, 64], sizes = [8, 32], strides = [1, 1]} : vector<8x128xf32> to vector<8x32xf32>
    %231 = math.tanh %230 : vector<8x32xf32>
    %232 = vector.extract_strided_slice %217 {offsets = [0, 96], sizes = [8, 32], strides = [1, 1]} : vector<8x128xf32> to vector<8x32xf32>
    %233 = arith.negf %232 : vector<8x32xf32>
    %234 = math.exp %233 : vector<8x32xf32>
    %cst_101 = arith.constant 1.000000e+00 : f32
    %235 = vector.broadcast %cst_101 : f32 to vector<8x32xf32>
    %236 = arith.addf %235, %234 : vector<8x32xf32>
    %237 = arith.divf %235, %236 : vector<8x32xf32>
    %c0_102 = arith.constant 0 : index
    %c0_103 = arith.constant 0 : index
    %238 = vector.load %arg11[%c0_102, %c0_103] : memref<8x32xf32, #tpu.memory_space<vmem>>, vector<8x32xf32>
    %239 = arith.mulf %229, %238 : vector<8x32xf32>
    %240 = arith.mulf %223, %231 : vector<8x32xf32>
    %241 = arith.addf %239, %240 : vector<8x32xf32>
    %242 = math.tanh %241 : vector<8x32xf32>
    %243 = arith.mulf %237, %242 : vector<8x32xf32>
    %c0_104 = arith.constant 0 : index
    %c0_105 = arith.constant 0 : index
    %244 = vector.load %arg11[%c0_104, %c0_105] : memref<8x32xf32, #tpu.memory_space<vmem>>, vector<8x32xf32>
    tpu.vector_store %arg11[%c0_104, %c0_105], %241 {strides = array<i32>} : memref<8x32xf32, #tpu.memory_space<vmem>>, vector<8x32xf32>,
    %c0_106 = arith.constant 0 : index
    %c0_107 = arith.constant 0 : index
    %245 = vector.load %arg10[%c0_106, %c0_107] : memref<8x32xf32, #tpu.memory_space<vmem>>, vector<8x32xf32>
    tpu.vector_store %arg10[%c0_106, %c0_107], %243 {strides = array<i32>} : memref<8x32xf32, #tpu.memory_space<vmem>>, vector<8x32xf32>,
    %246 = arith.index_cast %210 : i32 to index
    %c0_108 = arith.constant 0 : index
    %c0_109 = arith.constant 0 : index
    %247 = vector.load %arg12[%246, %c0_108, %c0_109] : memref<8x8x32xf32, #tpu.memory_space<vmem>>, vector<1x8x32xf32>
    %248 = vector.shape_cast %247 : vector<1x8x32xf32> to vector<8x32xf32>
    %249 = vector.shape_cast %243 : vector<8x32xf32> to vector<1x8x32xf32>
    tpu.vector_store %arg12[%246, %c0_108, %c0_109], %249 {strides = array<i32>} : memref<8x8x32xf32, #tpu.memory_space<vmem>>, vector<1x8x32xf32>,
    %c6_i32 = arith.constant 6 : i32
    %c1_i32_110 = arith.constant 1 : i32
    %250 = arith.muli %c6_i32, %c1_i32_110 : i32
    %c0_i32_111 = arith.constant 0 : i32
    %251 = arith.addi %c0_i32_111, %250 : i32
    %252 = arith.index_cast %251 : i32 to index
    %c0_112 = arith.constant 0 : index
    %c0_113 = arith.constant 0 : index
    %253 = vector.load %arg1[%252, %c0_112, %c0_113] : memref<8x8x128xf32, #tpu.memory_space<vmem>>, vector<1x8x128xf32>
    %254 = vector.shape_cast %253 : vector<1x8x128xf32> to vector<8x128xf32>
    %c0_114 = arith.constant 0 : index
    %c0_115 = arith.constant 0 : index
    %255 = vector.load %arg10[%c0_114, %c0_115] : memref<8x32xf32, #tpu.memory_space<vmem>>, vector<8x32xf32>
    %256 = arith.truncf %255 : vector<8x32xf32> to vector<8x32xbf16>
    %cst_116 = arith.constant dense<0.000000e+00> : vector<8x128xf32>
    %257 = tpu.matmul %256, %3, %cst_116 {dimension_numbers = #tpu.dot_dimension_numbers<[1], [0], [0], [1], [0, 0, 1, 1], [], []>} : vector<8x32xbf16>, vector<32x128xbf16>, vector<8x128xf32> -> vector<8x128xf32>
    %258 = arith.addf %254, %257 : vector<8x128xf32>
    %259 = vector.extract_strided_slice %258 {offsets = [0, 0], sizes = [8, 32], strides = [1, 1]} : vector<8x128xf32> to vector<8x32xf32>
    %260 = arith.negf %259 : vector<8x32xf32>
    %261 = math.exp %260 : vector<8x32xf32>
    %cst_117 = arith.constant 1.000000e+00 : f32
    %262 = vector.broadcast %cst_117 : f32 to vector<8x32xf32>
    %263 = arith.addf %262, %261 : vector<8x32xf32>
    %264 = arith.divf %262, %263 : vector<8x32xf32>
    %265 = vector.extract_strided_slice %258 {offsets = [0, 32], sizes = [8, 32], strides = [1, 1]} : vector<8x128xf32> to vector<8x32xf32>
    %266 = arith.negf %265 : vector<8x32xf32>
    %267 = math.exp %266 : vector<8x32xf32>
    %cst_118 = arith.constant 1.000000e+00 : f32
    %268 = vector.broadcast %cst_118 : f32 to vector<8x32xf32>
    %269 = arith.addf %268, %267 : vector<8x32xf32>
    %270 = arith.divf %268, %269 : vector<8x32xf32>
    %271 = vector.extract_strided_slice %258 {offsets = [0, 64], sizes = [8, 32], strides = [1, 1]} : vector<8x128xf32> to vector<8x32xf32>
    %272 = math.tanh %271 : vector<8x32xf32>
    %273 = vector.extract_strided_slice %258 {offsets = [0, 96], sizes = [8, 32], strides = [1, 1]} : vector<8x128xf32> to vector<8x32xf32>
    %274 = arith.negf %273 : vector<8x32xf32>
    %275 = math.exp %274 : vector<8x32xf32>
    %cst_119 = arith.constant 1.000000e+00 : f32
    %276 = vector.broadcast %cst_119 : f32 to vector<8x32xf32>
    %277 = arith.addf %276, %275 : vector<8x32xf32>
    %278 = arith.divf %276, %277 : vector<8x32xf32>
    %c0_120 = arith.constant 0 : index
    %c0_121 = arith.constant 0 : index
    %279 = vector.load %arg11[%c0_120, %c0_121] : memref<8x32xf32, #tpu.memory_space<vmem>>, vector<8x32xf32>
    %280 = arith.mulf %270, %279 : vector<8x32xf32>
    %281 = arith.mulf %264, %272 : vector<8x32xf32>
    %282 = arith.addf %280, %281 : vector<8x32xf32>
    %283 = math.tanh %282 : vector<8x32xf32>
    %284 = arith.mulf %278, %283 : vector<8x32xf32>
    %c0_122 = arith.constant 0 : index
    %c0_123 = arith.constant 0 : index
    %285 = vector.load %arg11[%c0_122, %c0_123] : memref<8x32xf32, #tpu.memory_space<vmem>>, vector<8x32xf32>
    tpu.vector_store %arg11[%c0_122, %c0_123], %282 {strides = array<i32>} : memref<8x32xf32, #tpu.memory_space<vmem>>, vector<8x32xf32>,
    %c0_124 = arith.constant 0 : index
    %c0_125 = arith.constant 0 : index
    %286 = vector.load %arg10[%c0_124, %c0_125] : memref<8x32xf32, #tpu.memory_space<vmem>>, vector<8x32xf32>
    tpu.vector_store %arg10[%c0_124, %c0_125], %284 {strides = array<i32>} : memref<8x32xf32, #tpu.memory_space<vmem>>, vector<8x32xf32>,
    %287 = arith.index_cast %251 : i32 to index
    %c0_126 = arith.constant 0 : index
    %c0_127 = arith.constant 0 : index
    %288 = vector.load %arg12[%287, %c0_126, %c0_127] : memref<8x8x32xf32, #tpu.memory_space<vmem>>, vector<1x8x32xf32>
    %289 = vector.shape_cast %288 : vector<1x8x32xf32> to vector<8x32xf32>
    %290 = vector.shape_cast %284 : vector<8x32xf32> to vector<1x8x32xf32>
    tpu.vector_store %arg12[%287, %c0_126, %c0_127], %290 {strides = array<i32>} : memref<8x8x32xf32, #tpu.memory_space<vmem>>, vector<1x8x32xf32>,
    %c7_i32 = arith.constant 7 : i32
    %c1_i32_128 = arith.constant 1 : i32
    %291 = arith.muli %c7_i32, %c1_i32_128 : i32
    %c0_i32_129 = arith.constant 0 : i32
    %292 = arith.addi %c0_i32_129, %291 : i32
    %293 = arith.index_cast %292 : i32 to index
    %c0_130 = arith.constant 0 : index
    %c0_131 = arith.constant 0 : index
    %294 = vector.load %arg1[%293, %c0_130, %c0_131] : memref<8x8x128xf32, #tpu.memory_space<vmem>>, vector<1x8x128xf32>
    %295 = vector.shape_cast %294 : vector<1x8x128xf32> to vector<8x128xf32>
    %c0_132 = arith.constant 0 : index
    %c0_133 = arith.constant 0 : index
    %296 = vector.load %arg10[%c0_132, %c0_133] : memref<8x32xf32, #tpu.memory_space<vmem>>, vector<8x32xf32>
    %297 = arith.truncf %296 : vector<8x32xf32> to vector<8x32xbf16>
    %cst_134 = arith.constant dense<0.000000e+00> : vector<8x128xf32>
    %298 = tpu.matmul %297, %3, %cst_134 {dimension_numbers = #tpu.dot_dimension_numbers<[1], [0], [0], [1], [0, 0, 1, 1], [], []>} : vector<8x32xbf16>, vector<32x128xbf16>, vector<8x128xf32> -> vector<8x128xf32>
    %299 = arith.addf %295, %298 : vector<8x128xf32>
    %300 = vector.extract_strided_slice %299 {offsets = [0, 0], sizes = [8, 32], strides = [1, 1]} : vector<8x128xf32> to vector<8x32xf32>
    %301 = arith.negf %300 : vector<8x32xf32>
    %302 = math.exp %301 : vector<8x32xf32>
    %cst_135 = arith.constant 1.000000e+00 : f32
    %303 = vector.broadcast %cst_135 : f32 to vector<8x32xf32>
    %304 = arith.addf %303, %302 : vector<8x32xf32>
    %305 = arith.divf %303, %304 : vector<8x32xf32>
    %306 = vector.extract_strided_slice %299 {offsets = [0, 32], sizes = [8, 32], strides = [1, 1]} : vector<8x128xf32> to vector<8x32xf32>
    %307 = arith.negf %306 : vector<8x32xf32>
    %308 = math.exp %307 : vector<8x32xf32>
    %cst_136 = arith.constant 1.000000e+00 : f32
    %309 = vector.broadcast %cst_136 : f32 to vector<8x32xf32>
    %310 = arith.addf %309, %308 : vector<8x32xf32>
    %311 = arith.divf %309, %310 : vector<8x32xf32>
    %312 = vector.extract_strided_slice %299 {offsets = [0, 64], sizes = [8, 32], strides = [1, 1]} : vector<8x128xf32> to vector<8x32xf32>
    %313 = math.tanh %312 : vector<8x32xf32>
    %314 = vector.extract_strided_slice %299 {offsets = [0, 96], sizes = [8, 32], strides = [1, 1]} : vector<8x128xf32> to vector<8x32xf32>
    %315 = arith.negf %314 : vector<8x32xf32>
    %316 = math.exp %315 : vector<8x32xf32>
    %cst_137 = arith.constant 1.000000e+00 : f32
    %317 = vector.broadcast %cst_137 : f32 to vector<8x32xf32>
    %318 = arith.addf %317, %316 : vector<8x32xf32>
    %319 = arith.divf %317, %318 : vector<8x32xf32>
    %c0_138 = arith.constant 0 : index
    %c0_139 = arith.constant 0 : index
    %320 = vector.load %arg11[%c0_138, %c0_139] : memref<8x32xf32, #tpu.memory_space<vmem>>, vector<8x32xf32>
    %321 = arith.mulf %311, %320 : vector<8x32xf32>
    %322 = arith.mulf %305, %313 : vector<8x32xf32>
    %323 = arith.addf %321, %322 : vector<8x32xf32>
    %324 = math.tanh %323 : vector<8x32xf32>
    %325 = arith.mulf %319, %324 : vector<8x32xf32>
    %c0_140 = arith.constant 0 : index
    %c0_141 = arith.constant 0 : index
    %326 = vector.load %arg11[%c0_140, %c0_141] : memref<8x32xf32, #tpu.memory_space<vmem>>, vector<8x32xf32>
    tpu.vector_store %arg11[%c0_140, %c0_141], %323 {strides = array<i32>} : memref<8x32xf32, #tpu.memory_space<vmem>>, vector<8x32xf32>,
    %c0_142 = arith.constant 0 : index
    %c0_143 = arith.constant 0 : index
    %327 = vector.load %arg10[%c0_142, %c0_143] : memref<8x32xf32, #tpu.memory_space<vmem>>, vector<8x32xf32>
    tpu.vector_store %arg10[%c0_142, %c0_143], %325 {strides = array<i32>} : memref<8x32xf32, #tpu.memory_space<vmem>>, vector<8x32xf32>,
    %328 = arith.index_cast %292 : i32 to index
    %c0_144 = arith.constant 0 : index
    %c0_145 = arith.constant 0 : index
    %329 = vector.load %arg12[%328, %c0_144, %c0_145] : memref<8x8x32xf32, #tpu.memory_space<vmem>>, vector<1x8x32xf32>
    %330 = vector.shape_cast %329 : vector<1x8x32xf32> to vector<8x32xf32>
    %331 = vector.shape_cast %325 : vector<8x32xf32> to vector<1x8x32xf32>
    tpu.vector_store %arg12[%328, %c0_144, %c0_145], %331 {strides = array<i32>} : memref<8x8x32xf32, #tpu.memory_space<vmem>>, vector<1x8x32xf32>,
    %c8_i32 = arith.constant 8 : i32
    %c0_146 = arith.constant 0 : index
    %c0_147 = arith.constant 0 : index
    %c0_148 = arith.constant 0 : index
    %332 = vector.load %arg12[%c0_146, %c0_147, %c0_148] : memref<8x8x32xf32, #tpu.memory_space<vmem>>, vector<8x8x32xf32>
    %333 = vector.shape_cast %332 : vector<8x8x32xf32> to vector<64x32xf32>
    %334 = arith.truncf %333 : vector<64x32xf32> to vector<64x32xbf16>
    %c0_149 = arith.constant 0 : index
    %c0_150 = arith.constant 0 : index
    %335 = vector.load %arg3[%c0_149, %c0_150] : memref<32x64xbf16, #tpu.memory_space<vmem>>, vector<32x64xbf16>
    %cst_151 = arith.constant dense<0.000000e+00> : vector<64x64xf32>
    %336 = tpu.matmul %334, %335, %cst_151 {dimension_numbers = #tpu.dot_dimension_numbers<[1], [0], [0], [1], [0, 0, 1, 1], [], []>} : vector<64x32xbf16>, vector<32x64xbf16>, vector<64x64xf32> -> vector<64x64xf32>
    %c0_152 = arith.constant 0 : index
    %c0_153 = arith.constant 0 : index
    %337 = vector.load %arg4[%c0_152, %c0_153] : memref<1x64xf32, #tpu.memory_space<vmem>>, vector<1x64xf32>
    %338 = vector.broadcast %337 : vector<1x64xf32> to vector<64x64xf32>
    %339 = arith.addf %336, %338 : vector<64x64xf32>
    %c0_154 = arith.constant 0 : index
    %c0_155 = arith.constant 0 : index
    %340 = vector.load %arg7[%c0_154, %c0_155] : memref<64x64xf32, #tpu.memory_space<vmem>>, vector<64x64xf32>
    tpu.vector_store %arg7[%c0_154, %c0_155], %339 {strides = array<i32>} : memref<64x64xf32, #tpu.memory_space<vmem>>, vector<64x64xf32>,
    %c0_156 = arith.constant 0 : index
    %c0_157 = arith.constant 0 : index
    %341 = vector.load %arg10[%c0_156, %c0_157] : memref<8x32xf32, #tpu.memory_space<vmem>>, vector<8x32xf32>
    %c0_158 = arith.constant 0 : index
    %c0_159 = arith.constant 0 : index
    %342 = vector.load %arg8[%c0_158, %c0_159] : memref<8x32xf32, #tpu.memory_space<vmem>>, vector<8x32xf32>
    tpu.vector_store %arg8[%c0_158, %c0_159], %341 {strides = array<i32>} : memref<8x32xf32, #tpu.memory_space<vmem>>, vector<8x32xf32>,
    %c0_160 = arith.constant 0 : index
    %c0_161 = arith.constant 0 : index
    %343 = vector.load %arg11[%c0_160, %c0_161] : memref<8x32xf32, #tpu.memory_space<vmem>>, vector<8x32xf32>
    %c0_162 = arith.constant 0 : index
    %c0_163 = arith.constant 0 : index
    %344 = vector.load %arg9[%c0_162, %c0_163] : memref<8x32xf32, #tpu.memory_space<vmem>>, vector<8x32xf32>
    tpu.vector_store %arg9[%c0_162, %c0_163], %343 {strides = array<i32>} : memref<8x32xf32, #tpu.memory_space<vmem>>, vector<8x32xf32>,
    return
  }
  func.func @transform_0(%arg0: i32) -> (i32, i32, i32) {
    %c0_i32 = arith.constant 0 : i32
    %c0_i32_0 = arith.constant 0 : i32
    %c0_i32_1 = arith.constant 0 : i32
    return %arg0, %c0_i32, %c0_i32_0 : i32, i32, i32
  }
  func.func @transform_1(%arg0: i32) -> (i32, i32) {
    %c0_i32 = arith.constant 0 : i32
    %c0_i32_0 = arith.constant 0 : i32
    %c0_i32_1 = arith.constant 0 : i32
    return %c0_i32, %c0_i32_0 : i32, i32
  }
  func.func @transform_2(%arg0: i32) -> (i32, i32) {
    %c0_i32 = arith.constant 0 : i32
    %c0_i32_0 = arith.constant 0 : i32
    %c0_i32_1 = arith.constant 0 : i32
    return %c0_i32, %c0_i32_0 : i32, i32
  }
  func.func @transform_3(%arg0: i32) -> (i32, i32) {
    %c0_i32 = arith.constant 0 : i32
    %c0_i32_0 = arith.constant 0 : i32
    %c0_i32_1 = arith.constant 0 : i32
    return %c0_i32, %c0_i32_0 : i32, i32
  }
  func.func @transform_4(%arg0: i32) -> (i32, i32) {
    %c0_i32 = arith.constant 0 : i32
    %c0_i32_0 = arith.constant 0 : i32
    %c0_i32_1 = arith.constant 0 : i32
    return %c0_i32, %c0_i32_0 : i32, i32
  }
  func.func @transform_5(%arg0: i32) -> (i32, i32) {
    %c0_i32 = arith.constant 0 : i32
    %c0_i32_0 = arith.constant 0 : i32
    %c0_i32_1 = arith.constant 0 : i32
    return %c0_i32, %c0_i32_0 : i32, i32
  }
  func.func @transform_6(%arg0: i32) -> (i32, i32) {
    %c0_i32 = arith.constant 0 : i32
    %c0_i32_0 = arith.constant 0 : i32
    return %arg0, %c0_i32 : i32, i32
  }
  func.func @transform_7(%arg0: i32) -> (i32, i32) {
    %c0_i32 = arith.constant 0 : i32
    %c0_i32_0 = arith.constant 0 : i32
    %c0_i32_1 = arith.constant 0 : i32
    return %c0_i32, %c0_i32_0 : i32, i32
  }
  func.func @transform_8(%arg0: i32) -> (i32, i32) {
    %c0_i32 = arith.constant 0 : i32
    %c0_i32_0 = arith.constant 0 : i32
    %c0_i32_1 = arith.constant 0 : i32
    return %c0_i32, %c0_i32_0 : i32, i32
  }
}

</mosaic_0001>

<llo_original>
// kernel: language_model_forward.2
$region0: #{language_model_forward.2}
  #allocation0 [shape = 'u32[]', space=smem, size = 0x4, offset = 0x4, fixed_abs, tag = 'smem constant byte address 0x4 - core index']
  #allocation1 [shape = 'u32[144,128]{1,0:T(1,128)}', space=vmem, size = 0x12000, scoped, tag = 'internal scratch']
  %s0 = inlined_call_operand.vmem [shape: bf16[64,32], index: 0, kind: input, shape index: {}]
  %s1 = inlined_call_operand.vmem [shape: bf16[32,128], index: 1, kind: input, shape index: {}]
  %s2 = inlined_call_operand.vmem [shape: f32[1,128], index: 2, kind: input, shape index: {}]
  %s3 = inlined_call_operand.vmem [shape: f32[64,128], index: 3, kind: output, shape index: {}]
  %s4 = sld [smem:[#allocation0]]
  $region22: #{language_model_forward.2} parent=0
    _
  %s6 = ssub.s32 1, %s4
  %s7 = scalar_select 0, %s6, %s4
  // Predicated region
  $region2: #{language_model_forward.2} parent=0 // pred_check
    _
  $region3: #{language_model_forward.2} parent=0 // pred_check_branch
    %9 = sbr.rel (0) target = $region5
  $region4: #{language_model_forward.2} parent=0 // pred_region
    _
  $region5: #{language_model_forward.2} parent=0 // pred_fallthru
    _
  // Predicated region
  $region6: #{language_model_forward.2} parent=0 // pred_check
    _
  $region7: #{language_model_forward.2} parent=0 // pred_check_branch
    %11 = sbr.rel (0) target = $region9
  $region8: #{language_model_forward.2} parent=0 // pred_region
    _
  $region9: #{language_model_forward.2} parent=0 // pred_fallthru
    _
  // Predicated region
  $region10: #{language_model_forward.2} parent=0 // pred_check
    _
  $region11: #{language_model_forward.2} parent=0 // pred_check_branch
    %13 = sbr.rel (0) target = $region13
  $region12: #{language_model_forward.2} parent=0 // pred_region
    _
  $region13: #{language_model_forward.2} parent=0 // pred_fallthru
    _
  %v15 = vld [vmem:[%s0] sm:$0xf]
  %v16 = vld [vmem:[%s0 + $0x4] sm:$0xf]
  %v17 = vld [vmem:[%s0 + $0x8] sm:$0xf]
  %v18 = vld [vmem:[%s0 + $0xc] sm:$0xf]
  %v19 = vld [vmem:[%s0 + $0x10] sm:$0xf]
  %v20 = vld [vmem:[%s0 + $0x14] sm:$0xf]
  %v21 = vld [vmem:[%s0 + $0x18] sm:$0xf]
  %v22 = vld [vmem:[%s0 + $0x1c] sm:$0xf]
  %v23 = vld [vmem:[%s1] sm:$0xf]
  %v24 = vld [vmem:[%s1 + $0x4] sm:$0xf]
  %v25 = vld [vmem:[%s1 + $0x8] sm:$0xf]
  %v26 = vld [vmem:[%s1 + $0xc] sm:$0xf]
  %v27 = vld [vmem:[%s2] sm:$0x1]
  %v29 = vlaneseq
  %v30 = vshrl.u32 %v29, 7
  %v31 = vsub.s32 0, %v30
  %v32 = vrot.slane %v27, %v31
  %v42 = vunpack.c.l.b16 %v15
  %v43 = vunpack.c.l.b16 %v16
  %v44 = vunpack.c.l.b16 %v17
  %v45 = vunpack.c.l.b16 %v18
  %v46 = vunpack.c.l.b16 %v19
  %v47 = vunpack.c.l.b16 %v20
  %v48 = vunpack.c.l.b16 %v21
  %v49 = vunpack.c.l.b16 %v22
  %v50 = vpack.c.b16 %v43, %v42
  %v51 = vpack.c.b16 %v45, %v44
  %v52 = vpack.c.b16 %v47, %v46
  %v53 = vpack.c.b16 %v49, %v48
  %v58 = vunpack.c.l.b16 %v23
  %v59 = vunpack.c.l.b16 %v24
  %v60 = vunpack.c.l.b16 %v25
  %v61 = vunpack.c.l.b16 %v26
  %v62 = vpack.c.b16 %v59, %v58
  %v63 = vpack.c.b16 %v61, %v60
  %vm66 = vcmask 261120
  %v68 = vsel %vm66, %v50, 0
  %v71 = vsel %vm66, %v51, 0
  %v74 = vsel %vm66, %v52, 0
  %v77 = vsel %vm66, %v53, 0
  %79 = vmatprep.subr.bf16.mxu0 0
  %80 = vmatpush1.bf16.msra.mxu0 %v62
  %81 = vmatprep.subr.bf16.mxu0 0
  %82 = vmatpush1.bf16.msra.mxu0 %v63
  %83 = vmatprep.subr.bf16.mxu0 0
  %84 = vmatpush1.bf16.msra.mxu0 0
  %85 = vmatprep.subr.bf16.mxu0 0
  %86 = vmatpush1.bf16.msra.mxu0 0
  %87 = vmatprep.subr.bf16.mxu0 0
  %88 = vmatpush1.bf16.msra.mxu0 0
  %89 = vmatprep.subr.bf16.mxu0 0
  %90 = vmatpush1.bf16.msra.mxu0 0
  %91 = vmatprep.subr.bf16.mxu0 0
  %92 = vmatpush1.bf16.msra.mxu0 0
  %93 = vmatprep.subr.bf16.mxu0 0
  %94 = vmatpush1.bf16.msra.mxu0 0
  %95 = vmatprep.subr.bf16.mxu0 0
  %96 = vmatpush1.bf16.msra.mxu0 0
  %97 = vmatprep.subr.bf16.mxu0 0
  %98 = vmatpush1.bf16.msra.mxu0 0
  %99 = vmatprep.subr.bf16.mxu0 0
  %100 = vmatpush1.bf16.msra.mxu0 0
  %101 = vmatprep.subr.bf16.mxu0 0
  %102 = vmatpush1.bf16.msra.mxu0 0
  %103 = vmatprep.subr.bf16.mxu0 0
  %104 = vmatpush1.bf16.msra.mxu0 0
  %105 = vmatprep.subr.bf16.mxu0 0
  %106 = vmatpush1.bf16.msra.mxu0 0
  %107 = vmatprep.subr.bf16.mxu0 0
  %108 = vmatpush1.bf16.msra.mxu0 0
  %109 = vmatprep.subr.bf16.mxu0 0
  %110 = vmatpush1.bf16.msra.mxu0 0
  %111 = vmatprep.mubr.bf16.mxu0 0
  %112 = vmatmul.mubr.bf16.gmra.mrb[0].mxu0 %v68
  %v113 = vpop.f32.mrb[0].mxu0
  %v114 = vadd.f32 %v32, %v113
  %v115 = vpop.f32.mrb[0].mxu0
  %v116 = vpop.f32.mrb[0].mxu0
  %v117 = vadd.f32 %v32, %v116
  %v118 = vpop.f32.mrb[0].mxu0
  %119 = vmatprep.mubr.bf16.mxu0 0
  %120 = vmatmul.mubr.bf16.gmra.mrb[0].mxu0 %v71
  %v121 = vpop.f32.mrb[0].mxu0
  %v122 = vadd.f32 %v32, %v121
  %v123 = vpop.f32.mrb[0].mxu0
  %v124 = vpop.f32.mrb[0].mxu0
  %v125 = vadd.f32 %v32, %v124
  %v126 = vpop.f32.mrb[0].mxu0
  %127 = vmatprep.mubr.bf16.mxu0 0
  %128 = vmatmul.mubr.bf16.gmra.mrb[0].mxu0 %v74
  %v129 = vpop.f32.mrb[0].mxu0
  %v130 = vadd.f32 %v32, %v129
  %v131 = vpop.f32.mrb[0].mxu0
  %v132 = vpop.f32.mrb[0].mxu0
  %v133 = vadd.f32 %v32, %v132
  %v134 = vpop.f32.mrb[0].mxu0
  %135 = vmatprep.mubr.bf16.mxu0 0
  %136 = vmatmul.mubr.bf16.gmra.mrb[0].mxu0 %v77
  %v137 = vpop.f32.mrb[0].mxu0
  %v138 = vadd.f32 %v32, %v137
  %v139 = vpop.f32.mrb[0].mxu0
  %v140 = vpop.f32.mrb[0].mxu0
  %v141 = vadd.f32 %v32, %v140
  %v142 = vpop.f32.mrb[0].mxu0
  %143 = vdwg.mxu0
  %144 = vst [vmem:[%s3] sm:$0xff] %v114
  %145 = vst [vmem:[%s3 + $0x8] sm:$0xff] %v117
  %146 = vst [vmem:[%s3 + $0x10] sm:$0xff] %v122
  %147 = vst [vmem:[%s3 + $0x18] sm:$0xff] %v125
  %148 = vst [vmem:[%s3 + $0x20] sm:$0xff] %v130
  %149 = vst [vmem:[%s3 + $0x28] sm:$0xff] %v133
  %150 = vst [vmem:[%s3 + $0x30] sm:$0xff] %v138
  %151 = vst [vmem:[%s3 + $0x38] sm:$0xff] %v141
  // Predicated region
  $region14: #{language_model_forward.2} parent=0 // pred_check
    _
  $region15: #{language_model_forward.2} parent=0 // pred_check_branch
    %153 = sbr.rel (0) target = $region17
  $region16: #{language_model_forward.2} parent=0 // pred_region
    _
  $region17: #{language_model_forward.2} parent=0 // pred_fallthru
    _
  // Predicated region
  $region18: #{language_model_forward.2} parent=0 // pred_check
    _
  $region19: #{language_model_forward.2} parent=0 // pred_check_branch
    %155 = sbr.rel (0) target = $region21
  $region20: #{language_model_forward.2} parent=0 // pred_region
    _
  $region21: #{language_model_forward.2} parent=0 // pred_fallthru
    _

// kernel: language_model_forward.3
$region0: #{language_model_forward.3}
  #allocation0 [shape = 'u32[]', space=smem, size = 0x4, offset = 0x4, fixed_abs, tag = 'smem constant byte address 0x4 - core index']
  #allocation1 [shape = 'u32[144,128]{1,0:T(1,128)}', space=vmem, size = 0x12000, scoped, tag = 'internal scratch']
  #allocation2 [shape = 'f32[8,32]{1,0:T(8,128)}', space=vmem, size = 0x1000, scoped, tag = 'scratch operand']
  #allocation3 [shape = 'f32[8,32]{1,0:T(8,128)}', space=vmem, size = 0x1000, scoped, tag = 'scratch operand']
  #allocation4 [shape = 'f32[8,8,32]{2,1,0:T(8,128)}', space=vmem, size = 0x8000, scoped, tag = 'scratch operand']
  %s0 = inlined_call_operand.vmem [shape: f32[8,8,128], index: 0, kind: input, shape index: {}]
  %s1 = inlined_call_operand.vmem [shape: bf16[32,128], index: 1, kind: input, shape index: {}]
  %s2 = inlined_call_operand.vmem [shape: bf16[32,64], index: 2, kind: input, shape index: {}]
  %s3 = inlined_call_operand.vmem [shape: f32[1,64], index: 3, kind: input, shape index: {}]
  %s4 = inlined_call_operand.vmem [shape: f32[8,32], index: 4, kind: input, shape index: {}, may-alias: {4,5}]
  %s5 = inlined_call_operand.vmem [shape: f32[8,32], index: 5, kind: input, shape index: {}, may-alias: {4,5}]
  %s6 = inlined_call_operand.hbm [shape: f32[64,64], index: 6, kind: output, shape index: {0}]
  %s7 = inlined_call_operand.hbm [shape: f32[8,32], index: 7, kind: output, shape index: {1}]
  %s8 = inlined_call_operand.hbm [shape: f32[8,32], index: 8, kind: output, shape index: {2}]
  %9 = xla_tuple %s6, %s7, %s8
  %s10 = sld [smem:[#allocation0]]
  $region54: #{language_model_forward.3} parent=0
    _
  %s12 = ssub.s32 1, %s10
  %s13 = scalar_select 0, %s12, %s10
  $region1: #{language_model_forward.3} parent=0
    #allocation5 [shape = 'u8[32768]{0}', space=vmem, size = 0x8000, scoped, tag = 'output window, operand 0, single buffered']
    #allocation6 [shape = 's32[1]{0}', space=sflag, size = 0x4, scoped, tag = 'scoped memory for language_model_forward.3']
    #allocation7 [shape = 'u8[4096]{0}', space=vmem, size = 0x1000, scoped, tag = 'output window, operand 1, single buffered']
    #allocation8 [shape = 's32[1]{0}', space=sflag, size = 0x4, scoped, tag = 'scoped memory for language_model_forward.3']
    #allocation9 [shape = 'u8[4096]{0}', space=vmem, size = 0x1000, scoped, tag = 'output window, operand 2, single buffered']
    %14 = vsyncpa [#allocation6], 0
    %15 = vsyncpa [#allocation8], 0
    // Predicated region
    $region2: #{language_model_forward.3} parent=1 // pred_check
      _
    $region3: #{language_model_forward.3} parent=1 // pred_check_branch
      %17 = sbr.rel (0) target = $region5
    $region4: #{language_model_forward.3} parent=1 // pred_region
      _
    $region5: #{language_model_forward.3} parent=1 // pred_fallthru
      _
    // Predicated region
    $region6: #{language_model_forward.3} parent=1 // pred_check
      _
    $region7: #{language_model_forward.3} parent=1 // pred_check_branch
      %19 = sbr.rel (0) target = $region9
    $region8: #{language_model_forward.3} parent=1 // pred_region
      _
    $region9: #{language_model_forward.3} parent=1 // pred_fallthru
      _
    // Predicated region
    $region10: #{language_model_forward.3} parent=1 // pred_check
      _
    $region11: #{language_model_forward.3} parent=1 // pred_check_branch
      %21 = sbr.rel (0) target = $region13
    $region12: #{language_model_forward.3} parent=1 // pred_region
      _
    $region13: #{language_model_forward.3} parent=1 // pred_fallthru
      _
    // Predicated region
    $region14: #{language_model_forward.3} parent=1 // pred_check
      _
    $region15: #{language_model_forward.3} parent=1 // pred_check_branch
      %23 = sbr.rel (0) target = $region17
    $region16: #{language_model_forward.3} parent=1 // pred_region
      _
    $region17: #{language_model_forward.3} parent=1 // pred_fallthru
      _
    // Predicated region
    $region18: #{language_model_forward.3} parent=1 // pred_check
      _
    $region19: #{language_model_forward.3} parent=1 // pred_check_branch
      %25 = sbr.rel (0) target = $region21
    $region20: #{language_model_forward.3} parent=1 // pred_region
      _
    $region21: #{language_model_forward.3} parent=1 // pred_fallthru
      _
    // Predicated region
    $region22: #{language_model_forward.3} parent=1 // pred_check
      _
    $region23: #{language_model_forward.3} parent=1 // pred_check_branch
      %27 = sbr.rel (0) target = $region25
    $region24: #{language_model_forward.3} parent=1 // pred_region
      _
    $region25: #{language_model_forward.3} parent=1 // pred_fallthru
      _
    %p29 = scmp.eq.s32.totalorder 0, 0
    // Predicated region
    $region26: #{language_model_forward.3} parent=1 // pred_check
      %p30 = pneg %p29
    $region27: #{language_model_forward.3} parent=1 // pred_check_branch
      %32 = sbr.rel (%p30) target = $region29
    $region28: #{language_model_forward.3} parent=1 // pred_region
      %v33 = vld [vmem:[%s4] sm:$0xff]
      %vm34 = vcmask 261120
      %35 = vst.msk [vmem:[#allocation2] sm:$0xff] %vm34, %v33
      %v36 = vld [vmem:[%s5] sm:$0xff]
      %37 = vst.msk [vmem:[#allocation3] sm:$0xff] %vm34, %v36
    $region29: #{language_model_forward.3} parent=1 // pred_fallthru
      _
    %v38 = vld [vmem:[%s1] sm:$0xf]
    %v39 = vld [vmem:[%s1 + $0x4] sm:$0xf]
    %v40 = vld [vmem:[%s1 + $0x8] sm:$0xf]
    %v41 = vld [vmem:[%s1 + $0xc] sm:$0xf]
    %v42 = vld [vmem:[%s0] sm:$0xff]
    %v43 = vld [vmem:[#allocation2] sm:$0xff]
    %v44 = vpack.c.bf16 %v43, %v43
    %v49 = vunpack.c.l.b16 %v38
    %v50 = vunpack.c.l.b16 %v39
    %v51 = vunpack.c.l.b16 %v40
    %v52 = vunpack.c.l.b16 %v41
    %v53 = vpack.c.b16 %v50, %v49
    %v54 = vpack.c.b16 %v52, %v51
    %vm57 = vcmask 261120
    %v59 = vsel %vm57, %v44, 0
    %61 = vmatprep.subr.bf16.mxu0 0
    %62 = vmatpush1.bf16.msra.mxu0 %v53
    %63 = vmatprep.subr.bf16.mxu0 0
    %64 = vmatpush1.bf16.msra.mxu0 %v54
    %65 = vmatprep.subr.bf16.mxu0 0
    %66 = vmatpush1.bf16.msra.mxu0 0
    %67 = vmatprep.subr.bf16.mxu0 0
    %68 = vmatpush1.bf16.msra.mxu0 0
    %69 = vmatprep.subr.bf16.mxu0 0
    %70 = vmatpush1.bf16.msra.mxu0 0
    %71 = vmatprep.subr.bf16.mxu0 0
    %72 = vmatpush1.bf16.msra.mxu0 0
    %73 = vmatprep.subr.bf16.mxu0 0
    %74 = vmatpush1.bf16.msra.mxu0 0
    %75 = vmatprep.subr.bf16.mxu0 0
    %76 = vmatpush1.bf16.msra.mxu0 0
    %77 = vmatprep.subr.bf16.mxu0 0
    %78 = vmatpush1.bf16.msra.mxu0 0
    %79 = vmatprep.subr.bf16.mxu0 0
    %80 = vmatpush1.bf16.msra.mxu0 0
    %81 = vmatprep.subr.bf16.mxu0 0
    %82 = vmatpush1.bf16.msra.mxu0 0
    %83 = vmatprep.subr.bf16.mxu0 0
    %84 = vmatpush1.bf16.msra.mxu0 0
    %85 = vmatprep.subr.bf16.mxu0 0
    %86 = vmatpush1.bf16.msra.mxu0 0
    %87 = vmatprep.subr.bf16.mxu0 0
    %88 = vmatpush1.bf16.msra.mxu0 0
    %89 = vmatprep.subr.bf16.mxu0 0
    %90 = vmatpush1.bf16.msra.mxu0 0
    %91 = vmatprep.subr.bf16.mxu0 0
    %92 = vmatpush1.bf16.msra.mxu0 0
    %93 = vmatprep.mubr.bf16.mxu0 0
    %94 = vmatmul.mubr.bf16.gmra.mrb[0].mxu0 %v59
    %v95 = vpop.f32.mrb[0].mxu0
    %v96 = vadd.f32 0.0, %v95
    %v97 = vpop.f32.mrb[0].mxu0
    %v98 = vpop.f32.mrb[0].mxu0
    %v99 = vpop.f32.mrb[0].mxu0
    %100 = vdwg.mxu0
    %v101 = vadd.f32 %v42, %v96
    %v102 = vxor.u32 %v101, 2147483648
    %v103 = vmul.f32 %v102, 1.442695
    %v104 = vpow.pop %v103
    %v105 = vadd.f32 %v104, 1.0
    %v106 = vrcp.pop %v105
    %v107 = vmul.f32 1.0, %v106
    %v108 = vtanh.pop %v101
    %v109 = vld [vmem:[#allocation3] sm:$0xff]
    %111 = vrot.lane.b32.xlu0 %v109, 32
    %v112 = vpop.permute.xlu0 %111
    %v114 = vmul.f32 %v107, %v112
    %116 = vrot.lane.b32.xlu0 %v108, 64
    %v117 = vpop.permute.xlu0 %116
    %v119 = vmul.f32 %v107, %v117
    %121 = vrot.lane.b32.xlu0 %v119, 32
    %v122 = vpop.permute.xlu0 %121
    %v124 = vadd.f32 %v114, %v122
    %v125 = vtanh.pop %v124
    %127 = vrot.lane.b32.xlu0 %v125, 64
    %v128 = vpop.permute.xlu0 %127
    %v130 = vmul.f32 %v107, %v128
    %132 = vrot.lane.b32.xlu0 %v124, 96
    %v133 = vpop.permute.xlu0 %132
    %135 = vst.msk [vmem:[#allocation3] sm:$0xff] %vm57, %v133
    %137 = vrot.lane.b32.xlu0 %v130, 32
    %v138 = vpop.permute.xlu0 %137
    %140 = vst.msk [vmem:[#allocation2] sm:$0xff] %vm57, %v138
    %141 = vst.msk [vmem:[#allocation4] sm:$0xff] %vm57, %v138
    %s142 = scalar_lea.vmem %s0, 8
    %v143 = vld [vmem:[%s142] sm:$0xff]
    %v144 = vld [vmem:[#allocation2] sm:$0xff]
    %v145 = vpack.c.bf16 %v144, %v144
    %v147 = vsel %vm57, %v145, 0
    %149 = vmatprep.subr.bf16.mxu0 0
    %150 = vmatpush1.bf16.msra.mxu0 %v53
    %151 = vmatprep.subr.bf16.mxu0 0
    %152 = vmatpush1.bf16.msra.mxu0 %v54
    %153 = vmatprep.subr.bf16.mxu0 0
    %154 = vmatpush1.bf16.msra.mxu0 0
    %155 = vmatprep.subr.bf16.mxu0 0
    %156 = vmatpush1.bf16.msra.mxu0 0
    %157 = vmatprep.subr.bf16.mxu0 0
    %158 = vmatpush1.bf16.msra.mxu0 0
    %159 = vmatprep.subr.bf16.mxu0 0
    %160 = vmatpush1.bf16.msra.mxu0 0
    %161 = vmatprep.subr.bf16.mxu0 0
    %162 = vmatpush1.bf16.msra.mxu0 0
    %163 = vmatprep.subr.bf16.mxu0 0
    %164 = vmatpush1.bf16.msra.mxu0 0
    %165 = vmatprep.subr.bf16.mxu0 0
    %166 = vmatpush1.bf16.msra.mxu0 0
    %167 = vmatprep.subr.bf16.mxu0 0
    %168 = vmatpush1.bf16.msra.mxu0 0
    %169 = vmatprep.subr.bf16.mxu0 0
    %170 = vmatpush1.bf16.msra.mxu0 0
    %171 = vmatprep.subr.bf16.mxu0 0
    %172 = vmatpush1.bf16.msra.mxu0 0
    %173 = vmatprep.subr.bf16.mxu0 0
    %174 = vmatpush1.bf16.msra.mxu0 0
    %175 = vmatprep.subr.bf16.mxu0 0
    %176 = vmatpush1.bf16.msra.mxu0 0
    %177 = vmatprep.subr.bf16.mxu0 0
    %178 = vmatpush1.bf16.msra.mxu0 0
    %179 = vmatprep.subr.bf16.mxu0 0
    %180 = vmatpush1.bf16.msra.mxu0 0
    %181 = vmatprep.mubr.bf16.mxu0 0
    %182 = vmatmul.mubr.bf16.gmra.mrb[0].mxu0 %v147
    %v183 = vpop.f32.mrb[0].mxu0
    %v184 = vadd.f32 0.0, %v183
    %v185 = vpop.f32.mrb[0].mxu0
    %v186 = vpop.f32.mrb[0].mxu0
    %v187 = vpop.f32.mrb[0].mxu0
    %188 = vdwg.mxu0
    %v189 = vadd.f32 %v143, %v184
    %v190 = vxor.u32 %v189, 2147483648
    %v191 = vmul.f32 %v190, 1.442695
    %v192 = vpow.pop %v191
    %v193 = vadd.f32 %v192, 1.0
    %v194 = vrcp.pop %v193
    %v195 = vmul.f32 1.0, %v194
    %v196 = vtanh.pop %v189
    %v197 = vld [vmem:[#allocation3] sm:$0xff]
    %199 = vrot.lane.b32.xlu0 %v197, 32
    %v200 = vpop.permute.xlu0 %199
    %v202 = vmul.f32 %v195, %v200
    %204 = vrot.lane.b32.xlu0 %v196, 64
    %v205 = vpop.permute.xlu0 %204
    %v207 = vmul.f32 %v195, %v205
    %209 = vrot.lane.b32.xlu0 %v207, 32
    %v210 = vpop.permute.xlu0 %209
    %v212 = vadd.f32 %v202, %v210
    %v213 = vtanh.pop %v212
    %215 = vrot.lane.b32.xlu0 %v213, 64
    %v216 = vpop.permute.xlu0 %215
    %v218 = vmul.f32 %v195, %v216
    %220 = vrot.lane.b32.xlu0 %v212, 96
    %v221 = vpop.permute.xlu0 %220
    %223 = vst.msk [vmem:[#allocation3] sm:$0xff] %vm57, %v221
    %225 = vrot.lane.b32.xlu0 %v218, 32
    %v226 = vpop.permute.xlu0 %225
    %228 = vst.msk [vmem:[#allocation2] sm:$0xff] %vm57, %v226
    %s229 = scalar_lea.vmem [#allocation4], 8
    %230 = vst.msk [vmem:[%s229] sm:$0xff] %vm57, %v226
    %s231 = scalar_lea.vmem %s0, 16
    %v232 = vld [vmem:[%s231] sm:$0xff]
    %v233 = vld [vmem:[#allocation2] sm:$0xff]
    %v234 = vpack.c.bf16 %v233, %v233
    %v236 = vsel %vm57, %v234, 0
    %238 = vmatprep.subr.bf16.mxu0 0
    %239 = vmatpush1.bf16.msra.mxu0 %v53
    %240 = vmatprep.subr.bf16.mxu0 0
    %241 = vmatpush1.bf16.msra.mxu0 %v54
    %242 = vmatprep.subr.bf16.mxu0 0
    %243 = vmatpush1.bf16.msra.mxu0 0
    %244 = vmatprep.subr.bf16.mxu0 0
    %245 = vmatpush1.bf16.msra.mxu0 0
    %246 = vmatprep.subr.bf16.mxu0 0
    %247 = vmatpush1.bf16.msra.mxu0 0
    %248 = vmatprep.subr.bf16.mxu0 0
    %249 = vmatpush1.bf16.msra.mxu0 0
    %250 = vmatprep.subr.bf16.mxu0 0
    %251 = vmatpush1.bf16.msra.mxu0 0
    %252 = vmatprep.subr.bf16.mxu0 0
    %253 = vmatpush1.bf16.msra.mxu0 0
    %254 = vmatprep.subr.bf16.mxu0 0
    %255 = vmatpush1.bf16.msra.mxu0 0
    %256 = vmatprep.subr.bf16.mxu0 0
    %257 = vmatpush1.bf16.msra.mxu0 0
    %258 = vmatprep.subr.bf16.mxu0 0
    %259 = vmatpush1.bf16.msra.mxu0 0
    %260 = vmatprep.subr.bf16.mxu0 0
    %261 = vmatpush1.bf16.msra.mxu0 0
    %262 = vmatprep.subr.bf16.mxu0 0
    %263 = vmatpush1.bf16.msra.mxu0 0
    %264 = vmatprep.subr.bf16.mxu0 0
    %265 = vmatpush1.bf16.msra.mxu0 0
    %266 = vmatprep.subr.bf16.mxu0 0
    %267 = vmatpush1.bf16.msra.mxu0 0
    %268 = vmatprep.subr.bf16.mxu0 0
    %269 = vmatpush1.bf16.msra.mxu0 0
    %270 = vmatprep.mubr.bf16.mxu0 0
    %271 = vmatmul.mubr.bf16.gmra.mrb[0].mxu0 %v236
    %v272 = vpop.f32.mrb[0].mxu0
    %v273 = vadd.f32 0.0, %v272
    %v274 = vpop.f32.mrb[0].mxu0
    %v275 = vpop.f32.mrb[0].mxu0
    %v276 = vpop.f32.mrb[0].mxu0
    %277 = vdwg.mxu0
    %v278 = vadd.f32 %v232, %v273
    %v279 = vxor.u32 %v278, 2147483648
    %v280 = vmul.f32 %v279, 1.442695
    %v281 = vpow.pop %v280
    %v282 = vadd.f32 %v281, 1.0
    %v283 = vrcp.pop %v282
    %v284 = vmul.f32 1.0, %v283
    %v285 = vtanh.pop %v278
    %v286 = vld [vmem:[#allocation3] sm:$0xff]
    %288 = vrot.lane.b32.xlu0 %v286, 32
    %v289 = vpop.permute.xlu0 %288
    %v291 = vmul.f32 %v284, %v289
    %293 = vrot.lane.b32.xlu0 %v285, 64
    %v294 = vpop.permute.xlu0 %293
    %v296 = vmul.f32 %v284, %v294
    %298 = vrot.lane.b32.xlu0 %v296, 32
    %v299 = vpop.permute.xlu0 %298
    %v301 = vadd.f32 %v291, %v299
    %v302 = vtanh.pop %v301
    %304 = vrot.lane.b32.xlu0 %v302, 64
    %v305 = vpop.permute.xlu0 %304
    %v307 = vmul.f32 %v284, %v305
    %309 = vrot.lane.b32.xlu0 %v301, 96
    %v310 = vpop.permute.xlu0 %309
    %312 = vst.msk [vmem:[#allocation3] sm:$0xff] %vm57, %v310
    %314 = vrot.lane.b32.xlu0 %v307, 32
    %v315 = vpop.permute.xlu0 %314
    %317 = vst.msk [vmem:[#allocation2] sm:$0xff] %vm57, %v315
    %s318 = scalar_lea.vmem [#allocation4], 16
    %319 = vst.msk [vmem:[%s318] sm:$0xff] %vm57, %v315
    %s320 = scalar_lea.vmem %s0, 24
    %v321 = vld [vmem:[%s320] sm:$0xff]
    %v322 = vld [vmem:[#allocation2] sm:$0xff]
    %v323 = vpack.c.bf16 %v322, %v322
    %v325 = vsel %vm57, %v323, 0
    %327 = vmatprep.subr.bf16.mxu0 0
    %328 = vmatpush1.bf16.msra.mxu0 %v53
    %329 = vmatprep.subr.bf16.mxu0 0
    %330 = vmatpush1.bf16.msra.mxu0 %v54
    %331 = vmatprep.subr.bf16.mxu0 0
    %332 = vmatpush1.bf16.msra.mxu0 0
    %333 = vmatprep.subr.bf16.mxu0 0
    %334 = vmatpush1.bf16.msra.mxu0 0
    %335 = vmatprep.subr.bf16.mxu0 0
    %336 = vmatpush1.bf16.msra.mxu0 0
    %337 = vmatprep.subr.bf16.mxu0 0
    %338 = vmatpush1.bf16.msra.mxu0 0
    %339 = vmatprep.subr.bf16.mxu0 0
    %340 = vmatpush1.bf16.msra.mxu0 0
    %341 = vmatprep.subr.bf16.mxu0 0
    %342 = vmatpush1.bf16.msra.mxu0 0
    %343 = vmatprep.subr.bf16.mxu0 0
    %344 = vmatpush1.bf16.msra.mxu0 0
    %345 = vmatprep.subr.bf16.mxu0 0
    %346 = vmatpush1.bf16.msra.mxu0 0
    %347 = vmatprep.subr.bf16.mxu0 0
    %348 = vmatpush1.bf16.msra.mxu0 0
    %349 = vmatprep.subr.bf16.mxu0 0
    %350 = vmatpush1.bf16.msra.mxu0 0
    %351 = vmatprep.subr.bf16.mxu0 0
    %352 = vmatpush1.bf16.msra.mxu0 0
    %353 = vmatprep.subr.bf16.mxu0 0
    %354 = vmatpush1.bf16.msra.mxu0 0
    %355 = vmatprep.subr.bf16.mxu0 0
    %356 = vmatpush1.bf16.msra.mxu0 0
    %357 = vmatprep.subr.bf16.mxu0 0
    %358 = vmatpush1.bf16.msra.mxu0 0
    %359 = vmatprep.mubr.bf16.mxu0 0
    %360 = vmatmul.mubr.bf16.gmra.mrb[0].mxu0 %v325
    %v361 = vpop.f32.mrb[0].mxu0
    %v362 = vadd.f32 0.0, %v361
    %v363 = vpop.f32.mrb[0].mxu0
    %v364 = vpop.f32.mrb[0].mxu0
    %v365 = vpop.f32.mrb[0].mxu0
    %366 = vdwg.mxu0
    %v367 = vadd.f32 %v321, %v362
    %v368 = vxor.u32 %v367, 2147483648
    %v369 = vmul.f32 %v368, 1.442695
    %v370 = vpow.pop %v369
    %v371 = vadd.f32 %v370, 1.0
    %v372 = vrcp.pop %v371
    %v373 = vmul.f32 1.0, %v372
    %v374 = vtanh.pop %v367
    %v375 = vld [vmem:[#allocation3] sm:$0xff]
    %377 = vrot.lane.b32.xlu0 %v375, 32
    %v378 = vpop.permute.xlu0 %377
    %v380 = vmul.f32 %v373, %v378
    %382 = vrot.lane.b32.xlu0 %v374, 64
    %v383 = vpop.permute.xlu0 %382
    %v385 = vmul.f32 %v373, %v383
    %387 = vrot.lane.b32.xlu0 %v385, 32
    %v388 = vpop.permute.xlu0 %387
    %v390 = vadd.f32 %v380, %v388
    %v391 = vtanh.pop %v390
    %393 = vrot.lane.b32.xlu0 %v391, 64
    %v394 = vpop.permute.xlu0 %393
    %v396 = vmul.f32 %v373, %v394
    %398 = vrot.lane.b32.xlu0 %v390, 96
    %v399 = vpop.permute.xlu0 %398
    %401 = vst.msk [vmem:[#allocation3] sm:$0xff] %vm57, %v399
    %403 = vrot.lane.b32.xlu0 %v396, 32
    %v404 = vpop.permute.xlu0 %403
    %406 = vst.msk [vmem:[#allocation2] sm:$0xff] %vm57, %v404
    %s407 = scalar_lea.vmem [#allocation4], 24
    %408 = vst.msk [vmem:[%s407] sm:$0xff] %vm57, %v404
    %s409 = scalar_lea.vmem %s0, 32
    %v410 = vld [vmem:[%s409] sm:$0xff]
    %v411 = vld [vmem:[#allocation2] sm:$0xff]
    %v412 = vpack.c.bf16 %v411, %v411
    %v414 = vsel %vm57, %v412, 0
    %416 = vmatprep.subr.bf16.mxu0 0
    %417 = vmatpush1.bf16.msra.mxu0 %v53
    %418 = vmatprep.subr.bf16.mxu0 0
    %419 = vmatpush1.bf16.msra.mxu0 %v54
    %420 = vmatprep.subr.bf16.mxu0 0
    %421 = vmatpush1.bf16.msra.mxu0 0
    %422 = vmatprep.subr.bf16.mxu0 0
    %423 = vmatpush1.bf16.msra.mxu0 0
    %424 = vmatprep.subr.bf16.mxu0 0
    %425 = vmatpush1.bf16.msra.mxu0 0
    %426 = vmatprep.subr.bf16.mxu0 0
    %427 = vmatpush1.bf16.msra.mxu0 0
    %428 = vmatprep.subr.bf16.mxu0 0
    %429 = vmatpush1.bf16.msra.mxu0 0
    %430 = vmatprep.subr.bf16.mxu0 0
    %431 = vmatpush1.bf16.msra.mxu0 0
    %432 = vmatprep.subr.bf16.mxu0 0
    %433 = vmatpush1.bf16.msra.mxu0 0
    %434 = vmatprep.subr.bf16.mxu0 0
    %435 = vmatpush1.bf16.msra.mxu0 0
    %436 = vmatprep.subr.bf16.mxu0 0
    %437 = vmatpush1.bf16.msra.mxu0 0
    %438 = vmatprep.subr.bf16.mxu0 0
    %439 = vmatpush1.bf16.msra.mxu0 0
    %440 = vmatprep.subr.bf16.mxu0 0
    %441 = vmatpush1.bf16.msra.mxu0 0
    %442 = vmatprep.subr.bf16.mxu0 0
    %443 = vmatpush1.bf16.msra.mxu0 0
    %444 = vmatprep.subr.bf16.mxu0 0
    %445 = vmatpush1.bf16.msra.mxu0 0
    %446 = vmatprep.subr.bf16.mxu0 0
    %447 = vmatpush1.bf16.msra.mxu0 0
    %448 = vmatprep.mubr.bf16.mxu0 0
    %449 = vmatmul.mubr.bf16.gmra.mrb[0].mxu0 %v414
    %v450 = vpop.f32.mrb[0].mxu0
    %v451 = vadd.f32 0.0, %v450
    %v452 = vpop.f32.mrb[0].mxu0
    %v453 = vpop.f32.mrb[0].mxu0
    %v454 = vpop.f32.mrb[0].mxu0
    %455 = vdwg.mxu0
    %v456 = vadd.f32 %v410, %v451
    %v457 = vxor.u32 %v456, 2147483648
    %v458 = vmul.f32 %v457, 1.442695
    %v459 = vpow.pop %v458
    %v460 = vadd.f32 %v459, 1.0
    %v461 = vrcp.pop %v460
    %v462 = vmul.f32 1.0, %v461
    %v463 = vtanh.pop %v456
    %v464 = vld [vmem:[#allocation3] sm:$0xff]
    %466 = vrot.lane.b32.xlu0 %v464, 32
    %v467 = vpop.permute.xlu0 %466
    %v469 = vmul.f32 %v462, %v467
    %471 = vrot.lane.b32.xlu0 %v463, 64
    %v472 = vpop.permute.xlu0 %471
    %v474 = vmul.f32 %v462, %v472
    %476 = vrot.lane.b32.xlu0 %v474, 32
    %v477 = vpop.permute.xlu0 %476
    %v479 = vadd.f32 %v469, %v477
    %v480 = vtanh.pop %v479
    %482 = vrot.lane.b32.xlu0 %v480, 64
    %v483 = vpop.permute.xlu0 %482
    %v485 = vmul.f32 %v462, %v483
    %487 = vrot.lane.b32.xlu0 %v479, 96
    %v488 = vpop.permute.xlu0 %487
    %490 = vst.msk [vmem:[#allocation3] sm:$0xff] %vm57, %v488
    %492 = vrot.lane.b32.xlu0 %v485, 32
    %v493 = vpop.permute.xlu0 %492
    %495 = vst.msk [vmem:[#allocation2] sm:$0xff] %vm57, %v493
    %s496 = scalar_lea.vmem [#allocation4], 32
    %497 = vst.msk [vmem:[%s496] sm:$0xff] %vm57, %v493
    %s498 = scalar_lea.vmem %s0, 40
    %v499 = vld [vmem:[%s498] sm:$0xff]
    %v500 = vld [vmem:[#allocation2] sm:$0xff]
    %v501 = vpack.c.bf16 %v500, %v500
    %v503 = vsel %vm57, %v501, 0
    %505 = vmatprep.subr.bf16.mxu0 0
    %506 = vmatpush1.bf16.msra.mxu0 %v53
    %507 = vmatprep.subr.bf16.mxu0 0
    %508 = vmatpush1.bf16.msra.mxu0 %v54
    %509 = vmatprep.subr.bf16.mxu0 0
    %510 = vmatpush1.bf16.msra.mxu0 0
    %511 = vmatprep.subr.bf16.mxu0 0
    %512 = vmatpush1.bf16.msra.mxu0 0
    %513 = vmatprep.subr.bf16.mxu0 0
    %514 = vmatpush1.bf16.msra.mxu0 0
    %515 = vmatprep.subr.bf16.mxu0 0
    %516 = vmatpush1.bf16.msra.mxu0 0
    %517 = vmatprep.subr.bf16.mxu0 0
    %518 = vmatpush1.bf16.msra.mxu0 0
    %519 = vmatprep.subr.bf16.mxu0 0
    %520 = vmatpush1.bf16.msra.mxu0 0
    %521 = vmatprep.subr.bf16.mxu0 0
    %522 = vmatpush1.bf16.msra.mxu0 0
    %523 = vmatprep.subr.bf16.mxu0 0
    %524 = vmatpush1.bf16.msra.mxu0 0
    %525 = vmatprep.subr.bf16.mxu0 0
    %526 = vmatpush1.bf16.msra.mxu0 0
    %527 = vmatprep.subr.bf16.mxu0 0
    %528 = vmatpush1.bf16.msra.mxu0 0
    %529 = vmatprep.subr.bf16.mxu0 0
    %530 = vmatpush1.bf16.msra.mxu0 0
    %531 = vmatprep.subr.bf16.mxu0 0
    %532 = vmatpush1.bf16.msra.mxu0 0
    %533 = vmatprep.subr.bf16.mxu0 0
    %534 = vmatpush1.bf16.msra.mxu0 0
    %535 = vmatprep.subr.bf16.mxu0 0
    %536 = vmatpush1.bf16.msra.mxu0 0
    %537 = vmatprep.mubr.bf16.mxu0 0
    %538 = vmatmul.mubr.bf16.gmra.mrb[0].mxu0 %v503
    %v539 = vpop.f32.mrb[0].mxu0
    %v540 = vadd.f32 0.0, %v539
    %v541 = vpop.f32.mrb[0].mxu0
    %v542 = vpop.f32.mrb[0].mxu0
    %v543 = vpop.f32.mrb[0].mxu0
    %544 = vdwg.mxu0
    %v545 = vadd.f32 %v499, %v540
    %v546 = vxor.u32 %v545, 2147483648
    %v547 = vmul.f32 %v546, 1.442695
    %v548 = vpow.pop %v547
    %v549 = vadd.f32 %v548, 1.0
    %v550 = vrcp.pop %v549
    %v551 = vmul.f32 1.0, %v550
    %v552 = vtanh.pop %v545
    %v553 = vld [vmem:[#allocation3] sm:$0xff]
    %555 = vrot.lane.b32.xlu0 %v553, 32
    %v556 = vpop.permute.xlu0 %555
    %v558 = vmul.f32 %v551, %v556
    %560 = vrot.lane.b32.xlu0 %v552, 64
    %v561 = vpop.permute.xlu0 %560
    %v563 = vmul.f32 %v551, %v561
    %565 = vrot.lane.b32.xlu0 %v563, 32
    %v566 = vpop.permute.xlu0 %565
    %v568 = vadd.f32 %v558, %v566
    %v569 = vtanh.pop %v568
    %571 = vrot.lane.b32.xlu0 %v569, 64
    %v572 = vpop.permute.xlu0 %571
    %v574 = vmul.f32 %v551, %v572
    %576 = vrot.lane.b32.xlu0 %v568, 96
    %v577 = vpop.permute.xlu0 %576
    %579 = vst.msk [vmem:[#allocation3] sm:$0xff] %vm57, %v577
    %581 = vrot.lane.b32.xlu0 %v574, 32
    %v582 = vpop.permute.xlu0 %581
    %584 = vst.msk [vmem:[#allocation2] sm:$0xff] %vm57, %v582
    %s585 = scalar_lea.vmem [#allocation4], 40
    %586 = vst.msk [vmem:[%s585] sm:$0xff] %vm57, %v582
    %s587 = scalar_lea.vmem %s0, 48
    %v588 = vld [vmem:[%s587] sm:$0xff]
    %v589 = vld [vmem:[#allocation2] sm:$0xff]
    %v590 = vpack.c.bf16 %v589, %v589
    %v592 = vsel %vm57, %v590, 0
    %594 = vmatprep.subr.bf16.mxu0 0
    %595 = vmatpush1.bf16.msra.mxu0 %v53
    %596 = vmatprep.subr.bf16.mxu0 0
    %597 = vmatpush1.bf16.msra.mxu0 %v54
    %598 = vmatprep.subr.bf16.mxu0 0
    %599 = vmatpush1.bf16.msra.mxu0 0
    %600 = vmatprep.subr.bf16.mxu0 0
    %601 = vmatpush1.bf16.msra.mxu0 0
    %602 = vmatprep.subr.bf16.mxu0 0
    %603 = vmatpush1.bf16.msra.mxu0 0
    %604 = vmatprep.subr.bf16.mxu0 0
    %605 = vmatpush1.bf16.msra.mxu0 0
    %606 = vmatprep.subr.bf16.mxu0 0
    %607 = vmatpush1.bf16.msra.mxu0 0
    %608 = vmatprep.subr.bf16.mxu0 0
    %609 = vmatpush1.bf16.msra.mxu0 0
    %610 = vmatprep.subr.bf16.mxu0 0
    %611 = vmatpush1.bf16.msra.mxu0 0
    %612 = vmatprep.subr.bf16.mxu0 0
    %613 = vmatpush1.bf16.msra.mxu0 0
    %614 = vmatprep.subr.bf16.mxu0 0
    %615 = vmatpush1.bf16.msra.mxu0 0
    %616 = vmatprep.subr.bf16.mxu0 0
    %617 = vmatpush1.bf16.msra.mxu0 0
    %618 = vmatprep.subr.bf16.mxu0 0
    %619 = vmatpush1.bf16.msra.mxu0 0
    %620 = vmatprep.subr.bf16.mxu0 0
    %621 = vmatpush1.bf16.msra.mxu0 0
    %622 = vmatprep.subr.bf16.mxu0 0
    %623 = vmatpush1.bf16.msra.mxu0 0
    %624 = vmatprep.subr.bf16.mxu0 0
    %625 = vmatpush1.bf16.msra.mxu0 0
    %626 = vmatprep.mubr.bf16.mxu0 0
    %627 = vmatmul.mubr.bf16.gmra.mrb[0].mxu0 %v592
    %v628 = vpop.f32.mrb[0].mxu0
    %v629 = vadd.f32 0.0, %v628
    %v630 = vpop.f32.mrb[0].mxu0
    %v631 = vpop.f32.mrb[0].mxu0
    %v632 = vpop.f32.mrb[0].mxu0
    %633 = vdwg.mxu0
    %v634 = vadd.f32 %v588, %v629
    %v635 = vxor.u32 %v634, 2147483648
    %v636 = vmul.f32 %v635, 1.442695
    %v637 = vpow.pop %v636
    %v638 = vadd.f32 %v637, 1.0
    %v639 = vrcp.pop %v638
    %v640 = vmul.f32 1.0, %v639
    %v641 = vtanh.pop %v634
    %v642 = vld [vmem:[#allocation3] sm:$0xff]
    %644 = vrot.lane.b32.xlu0 %v642, 32
    %v645 = vpop.permute.xlu0 %644
    %v647 = vmul.f32 %v640, %v645
    %649 = vrot.lane.b32.xlu0 %v641, 64
    %v650 = vpop.permute.xlu0 %649
    %v652 = vmul.f32 %v640, %v650
    %654 = vrot.lane.b32.xlu0 %v652, 32
    %v655 = vpop.permute.xlu0 %654
    %v657 = vadd.f32 %v647, %v655
    %v658 = vtanh.pop %v657
    %660 = vrot.lane.b32.xlu0 %v658, 64
    %v661 = vpop.permute.xlu0 %660
    %v663 = vmul.f32 %v640, %v661
    %665 = vrot.lane.b32.xlu0 %v657, 96
    %v666 = vpop.permute.xlu0 %665
    %668 = vst.msk [vmem:[#allocation3] sm:$0xff] %vm57, %v666
    %670 = vrot.lane.b32.xlu0 %v663, 32
    %v671 = vpop.permute.xlu0 %670
    %673 = vst.msk [vmem:[#allocation2] sm:$0xff] %vm57, %v671
    %s674 = scalar_lea.vmem [#allocation4], 48
    %675 = vst.msk [vmem:[%s674] sm:$0xff] %vm57, %v671
    %s676 = scalar_lea.vmem %s0, 56
    %v677 = vld [vmem:[%s676] sm:$0xff]
    %v678 = vld [vmem:[#allocation2] sm:$0xff]
    %v679 = vpack.c.bf16 %v678, %v678
    %v681 = vsel %vm57, %v679, 0
    %683 = vmatprep.subr.bf16.mxu0 0
    %684 = vmatpush1.bf16.msra.mxu0 %v53
    %685 = vmatprep.subr.bf16.mxu0 0
    %686 = vmatpush1.bf16.msra.mxu0 %v54
    %687 = vmatprep.subr.bf16.mxu0 0
    %688 = vmatpush1.bf16.msra.mxu0 0
    %689 = vmatprep.subr.bf16.mxu0 0
    %690 = vmatpush1.bf16.msra.mxu0 0
    %691 = vmatprep.subr.bf16.mxu0 0
    %692 = vmatpush1.bf16.msra.mxu0 0
    %693 = vmatprep.subr.bf16.mxu0 0
    %694 = vmatpush1.bf16.msra.mxu0 0
    %695 = vmatprep.subr.bf16.mxu0 0
    %696 = vmatpush1.bf16.msra.mxu0 0
    %697 = vmatprep.subr.bf16.mxu0 0
    %698 = vmatpush1.bf16.msra.mxu0 0
    %699 = vmatprep.subr.bf16.mxu0 0
    %700 = vmatpush1.bf16.msra.mxu0 0
    %701 = vmatprep.subr.bf16.mxu0 0
    %702 = vmatpush1.bf16.msra.mxu0 0
    %703 = vmatprep.subr.bf16.mxu0 0
    %704 = vmatpush1.bf16.msra.mxu0 0
    %705 = vmatprep.subr.bf16.mxu0 0
    %706 = vmatpush1.bf16.msra.mxu0 0
    %707 = vmatprep.subr.bf16.mxu0 0
    %708 = vmatpush1.bf16.msra.mxu0 0
    %709 = vmatprep.subr.bf16.mxu0 0
    %710 = vmatpush1.bf16.msra.mxu0 0
    %711 = vmatprep.subr.bf16.mxu0 0
    %712 = vmatpush1.bf16.msra.mxu0 0
    %713 = vmatprep.subr.bf16.mxu0 0
    %714 = vmatpush1.bf16.msra.mxu0 0
    %715 = vmatprep.mubr.bf16.mxu0 0
    %716 = vmatmul.mubr.bf16.gmra.mrb[0].mxu0 %v681
    %v717 = vpop.f32.mrb[0].mxu0
    %v718 = vadd.f32 0.0, %v717
    %v719 = vpop.f32.mrb[0].mxu0
    %v720 = vpop.f32.mrb[0].mxu0
    %v721 = vpop.f32.mrb[0].mxu0
    %722 = vdwg.mxu0
    %v723 = vadd.f32 %v677, %v718
    %v724 = vxor.u32 %v723, 2147483648
    %v725 = vmul.f32 %v724, 1.442695
    %v726 = vpow.pop %v725
    %v727 = vadd.f32 %v726, 1.0
    %v728 = vrcp.pop %v727
    %v729 = vmul.f32 1.0, %v728
    %v730 = vtanh.pop %v723
    %v731 = vld [vmem:[#allocation3] sm:$0xff]
    %733 = vrot.lane.b32.xlu0 %v731, 32
    %v734 = vpop.permute.xlu0 %733
    %v736 = vmul.f32 %v729, %v734
    %738 = vrot.lane.b32.xlu0 %v730, 64
    %v739 = vpop.permute.xlu0 %738
    %v741 = vmul.f32 %v729, %v739
    %743 = vrot.lane.b32.xlu0 %v741, 32
    %v744 = vpop.permute.xlu0 %743
    %v746 = vadd.f32 %v736, %v744
    %v747 = vtanh.pop %v746
    %749 = vrot.lane.b32.xlu0 %v747, 64
    %v750 = vpop.permute.xlu0 %749
    %v752 = vmul.f32 %v729, %v750
    %754 = vrot.lane.b32.xlu0 %v746, 96
    %v755 = vpop.permute.xlu0 %754
    %757 = vst.msk [vmem:[#allocation3] sm:$0xff] %vm57, %v755
    %759 = vrot.lane.b32.xlu0 %v752, 32
    %v760 = vpop.permute.xlu0 %759
    %762 = vst.msk [vmem:[#allocation2] sm:$0xff] %vm57, %v760
    %s763 = scalar_lea.vmem [#allocation4], 56
    %764 = vst.msk [vmem:[%s763] sm:$0xff] %vm57, %v760
    %v765 = vld [vmem:[#allocation4] sm:$0xff]
    %v766 = vld [vmem:[#allocation4 + $0x8] sm:$0xff]
    %v767 = vld [vmem:[#allocation4 + $0x10] sm:$0xff]
    %v768 = vld [vmem:[#allocation4 + $0x18] sm:$0xff]
    %v769 = vld [vmem:[#allocation4 + $0x20] sm:$0xff]
    %v770 = vld [vmem:[#allocation4 + $0x28] sm:$0xff]
    %v771 = vld [vmem:[#allocation4 + $0x30] sm:$0xff]
    %v772 = vld [vmem:[#allocation4 + $0x38] sm:$0xff]
    %v773 = vpack.c.bf16 %v766, %v765
    %v774 = vpack.c.bf16 %v768, %v767
    %v775 = vpack.c.bf16 %v770, %v769
    %v776 = vpack.c.bf16 %v772, %v771
    %v777 = vld [vmem:[%s2] sm:$0xf]
    %v778 = vld [vmem:[%s2 + $0x4] sm:$0xf]
    %v779 = vld [vmem:[%s2 + $0x8] sm:$0xf]
    %v780 = vld [vmem:[%s2 + $0xc] sm:$0xf]
    %v781 = vld [vmem:[%s3] sm:$0x1]
    %v783 = vlaneseq
    %v784 = vshrl.u32 %v783, 7
    %v785 = vsub.s32 0, %v784
    %v786 = vrot.slane %v781, %v785
    %v792 = vunpack.c.l.b16 %v777
    %v793 = vunpack.c.l.b16 %v778
    %v794 = vunpack.c.l.b16 %v779
    %v795 = vunpack.c.l.b16 %v780
    %v796 = vpack.c.b16 %v793, %v792
    %v797 = vpack.c.b16 %v795, %v794
    %v801 = vsel %vm57, %v773, 0
    %v804 = vsel %vm57, %v774, 0
    %v807 = vsel %vm57, %v775, 0
    %v810 = vsel %vm57, %v776, 0
    %812 = vmatprep.subr.bf16.mxu0 0
    %813 = vmatpush1.bf16.msra.mxu0 %v796
    %814 = vmatprep.subr.bf16.mxu0 0
    %815 = vmatpush1.bf16.msra.mxu0 %v797
    %816 = vmatprep.subr.bf16.mxu0 0
    %817 = vmatpush1.bf16.msra.mxu0 0
    %818 = vmatprep.subr.bf16.mxu0 0
    %819 = vmatpush1.bf16.msra.mxu0 0
    %820 = vmatprep.subr.bf16.mxu0 0
    %821 = vmatpush1.bf16.msra.mxu0 0
    %822 = vmatprep.subr.bf16.mxu0 0
    %823 = vmatpush1.bf16.msra.mxu0 0
    %824 = vmatprep.subr.bf16.mxu0 0
    %825 = vmatpush1.bf16.msra.mxu0 0
    %826 = vmatprep.subr.bf16.mxu0 0
    %827 = vmatpush1.bf16.msra.mxu0 0
    %828 = vmatprep.subr.bf16.mxu0 0
    %829 = vmatpush1.bf16.msra.mxu0 0
    %830 = vmatprep.subr.bf16.mxu0 0
    %831 = vmatpush1.bf16.msra.mxu0 0
    %832 = vmatprep.subr.bf16.mxu0 0
    %833 = vmatpush1.bf16.msra.mxu0 0
    %834 = vmatprep.subr.bf16.mxu0 0
    %835 = vmatpush1.bf16.msra.mxu0 0
    %836 = vmatprep.subr.bf16.mxu0 0
    %837 = vmatpush1.bf16.msra.mxu0 0
    %838 = vmatprep.subr.bf16.mxu0 0
    %839 = vmatpush1.bf16.msra.mxu0 0
    %840 = vmatprep.subr.bf16.mxu0 0
    %841 = vmatpush1.bf16.msra.mxu0 0
    %842 = vmatprep.subr.bf16.mxu0 0
    %843 = vmatpush1.bf16.msra.mxu0 0
    %844 = vmatprep.mubr.bf16.mxu0 0
    %845 = vmatmul.mubr.bf16.gmra.mrb[0].mxu0 %v801
    %v846 = vpop.f32.mrb[0].mxu0
    %v847 = vadd.f32 %v786, %v846
    %v848 = vpop.f32.mrb[0].mxu0
    %v849 = vpop.f32.mrb[0].mxu0
    %v850 = vadd.f32 %v786, %v849
    %v851 = vpop.f32.mrb[0].mxu0
    %852 = vmatprep.mubr.bf16.mxu0 0
    %853 = vmatmul.mubr.bf16.gmra.mrb[0].mxu0 %v804
    %v854 = vpop.f32.mrb[0].mxu0
    %v855 = vadd.f32 %v786, %v854
    %v856 = vpop.f32.mrb[0].mxu0
    %v857 = vpop.f32.mrb[0].mxu0
    %v858 = vadd.f32 %v786, %v857
    %v859 = vpop.f32.mrb[0].mxu0
    %860 = vmatprep.mubr.bf16.mxu0 0
    %861 = vmatmul.mubr.bf16.gmra.mrb[0].mxu0 %v807
    %v862 = vpop.f32.mrb[0].mxu0
    %v863 = vadd.f32 %v786, %v862
    %v864 = vpop.f32.mrb[0].mxu0
    %v865 = vpop.f32.mrb[0].mxu0
    %v866 = vadd.f32 %v786, %v865
    %v867 = vpop.f32.mrb[0].mxu0
    %868 = vmatprep.mubr.bf16.mxu0 0
    %869 = vmatmul.mubr.bf16.gmra.mrb[0].mxu0 %v810
    %v870 = vpop.f32.mrb[0].mxu0
    %v871 = vadd.f32 %v786, %v870
    %v872 = vpop.f32.mrb[0].mxu0
    %v873 = vpop.f32.mrb[0].mxu0
    %v874 = vadd.f32 %v786, %v873
    %v875 = vpop.f32.mrb[0].mxu0
    %876 = vdwg.mxu0
    %vm877 = vcmask 523264
    %878 = vst.msk [vmem:[#allocation5] sm:$0xff] %vm877, %v847
    %879 = vst.msk [vmem:[#allocation5 + $0x8] sm:$0xff] %vm877, %v850
    %880 = vst.msk [vmem:[#allocation5 + $0x10] sm:$0xff] %vm877, %v855
    %881 = vst.msk [vmem:[#allocation5 + $0x18] sm:$0xff] %vm877, %v858
    %882 = vst.msk [vmem:[#allocation5 + $0x20] sm:$0xff] %vm877, %v863
    %883 = vst.msk [vmem:[#allocation5 + $0x28] sm:$0xff] %vm877, %v866
    %884 = vst.msk [vmem:[#allocation5 + $0x30] sm:$0xff] %vm877, %v871
    %885 = vst.msk [vmem:[#allocation5 + $0x38] sm:$0xff] %vm877, %v874
    %v886 = vld [vmem:[#allocation2] sm:$0xff]
    %887 = vst.msk [vmem:[#allocation7] sm:$0xff] %vm57, %v886
    %v888 = vld [vmem:[#allocation3] sm:$0xff]
    %889 = vst.msk [vmem:[#allocation9] sm:$0xff] %vm57, %v888
    // Predicated region
    $region30: #{language_model_forward.3} parent=1 // pred_check
      _
    $region31: #{language_model_forward.3} parent=1 // pred_check_branch
      %891 = sbr.rel (0) target = $region33
    $region32: #{language_model_forward.3} parent=1 // pred_region
      %s893 = ssub.s32 1024, 1024
      %894 = vsyncadd [#allocation6], %s893
      %s895 = sshll.u32 [#allocation5], 4
      %s896 = int_to_ptr.vmem [resolvable:$true] %s895
      %901 = dma.vmem_to_hbm [thread:$0]  %s896, 1024, %s6, [#allocation6], 128, 128, 8
    $region33: #{language_model_forward.3} parent=1 // pred_fallthru
      _
    // Predicated region
    $region34: #{language_model_forward.3} parent=1 // pred_check
      _
    $region35: #{language_model_forward.3} parent=1 // pred_check_branch
      %903 = sbr.rel (0) target = $region37
    $region36: #{language_model_forward.3} parent=1 // pred_region
      %s905 = ssub.s32 128, 128
      %906 = vsyncadd [#allocation8], %s905
      %s908 = sshll.u32 [#allocation7], 4
      %s909 = int_to_ptr.vmem [resolvable:$true] %s908
      %911 = dma.vmem_to_hbm [thread:$0]  %s909, 128, %s7, [#allocation8]
    $region37: #{language_model_forward.3} parent=1 // pred_fallthru
      _
    // Predicated region
    $region38: #{language_model_forward.3} parent=1 // pred_check
      _
    $region39: #{language_model_forward.3} parent=1 // pred_check_branch
      %913 = sbr.rel (0) target = $region41
    $region40: #{language_model_forward.3} parent=1 // pred_region
      %s915 = ssub.s32 128, 128
      %916 = vsyncadd [#allocation8], %s915
      %s918 = sshll.u32 [#allocation9], 4
      %s919 = int_to_ptr.vmem [resolvable:$true] %s918
      %921 = dma.vmem_to_hbm [thread:$0]  %s919, 128, %s8, [#allocation8]
    $region41: #{language_model_forward.3} parent=1 // pred_fallthru
      _
    // Predicated region
    $region42: #{language_model_forward.3} parent=1 // pred_check
      _
    $region43: #{language_model_forward.3} parent=1 // pred_check_branch
      %923 = sbr.rel (0) target = $region45
    $region44: #{language_model_forward.3} parent=1 // pred_region
      %924 = dma.done [#allocation6], 1024
    $region45: #{language_model_forward.3} parent=1 // pred_fallthru
      _
    // Predicated region
    $region46: #{language_model_forward.3} parent=1 // pred_check
      _
    $region47: #{language_model_forward.3} parent=1 // pred_check_branch
      %926 = sbr.rel (0) target = $region49
    $region48: #{language_model_forward.3} parent=1 // pred_region
      %927 = dma.done [#allocation8], 128
    $region49: #{language_model_forward.3} parent=1 // pred_fallthru
      _
    // Predicated region
    $region50: #{language_model_forward.3} parent=1 // pred_check
      _
    $region51: #{language_model_forward.3} parent=1 // pred_check_branch
      %929 = sbr.rel (0) target = $region53
    $region52: #{language_model_forward.3} parent=1 // pred_region
      %930 = dma.done [#allocation8], 128
    $region53: #{language_model_forward.3} parent=1 // pred_fallthru
      _
    %931 = vsyncpa [#allocation6], 1
    %932 = vsyncpa [#allocation8], 1

</llo_original>
